<compile_context>
chip_gen: v5e
topology: v5e:2x2
jax: 0.10.0
libtpu: 0.0.40
codegen_flags: <defaults>
</compile_context>

<pallas_src>
import functools

import jax
import jax.numpy as jnp
from jax.experimental import pallas as pl
from jax.experimental.pallas import tpu as pltpu

LEAK = 0.2  # LeakyReLU negative slope used throughout core_net


# ---------------------------------------------------------------------------
# Pallas kernels
# ---------------------------------------------------------------------------
def _linear_act_kernel(x_ref, w_ref, b_ref, o_ref, *, negative_slope):
    # x_ref: (TM, K)  w_ref: (K, N)  b_ref: (1, N)  o_ref: (TM, N)
    # Feed the native dtype straight into the MXU (no explicit f32 cast);
    # accumulate in f32 via preferred_element_type.
    y = jnp.dot(x_ref[...], w_ref[...], preferred_element_type=jnp.float32)
    y = y + b_ref[...].astype(jnp.float32)
    if negative_slope is not None:
        y = jnp.where(y > 0, y, jnp.float32(negative_slope) * y)
    o_ref[...] = y.astype(o_ref.dtype)


def _mean_pool_kernel(x_ref, o_ref):
    # x_ref: (B, S, C) -> o_ref: (B, C)  (sublane reduce on the XLU)
    o_ref[...] = jnp.mean(x_ref[...].astype(jnp.float32), axis=1).astype(o_ref.dtype)


# ---------------------------------------------------------------------------
# Pallas wrappers
# ---------------------------------------------------------------------------
def _row_tile(m, max_rows=1024):
    """Large M tiles, but keep >=2 grid steps when M is big enough so v7x's
    second TensorCore gets work (dimension_semantics=('parallel',))."""
    if m > max_rows:
        return max_rows                      # multiple of 8; partial tail is masked
    if m >= 256 and m % 16 == 0:
        return m // 2                        # 2 grid steps, still a multiple of 8
    return m                                 # single full block


def linear_act(x, w, b, *, negative_slope=None, pad_out_to=None, max_rows=1024):
    """y = act(x @ w + b).  x: (M, K), w: (K, N), b: (N,) -> (M, N) in x.dtype.

    If pad_out_to > N, the kernel writes a lane-dense (M, pad_out_to) tile
    (zero-padded W/b, full unmasked vector stores) which is sliced back here.
    """
    M, K = x.shape
    Kw, N = w.shape
    assert K == Kw, (K, Kw)

    n_out = N
    if pad_out_to is not None and N < pad_out_to:
        w = jnp.pad(w, ((0, 0), (0, pad_out_to - N)))
        b = jnp.pad(b, (0, pad_out_to - N))
        n_out = pad_out_to
    b2 = b.reshape(1, n_out).astype(jnp.float32)

    tm = _row_tile(M, max_rows)
    grid = (pl.cdiv(M, tm),)

    out = pl.pallas_call(
        functools.partial(_linear_act_kernel, negative_slope=negative_slope),
        out_shape=jax.ShapeDtypeStruct((M, n_out), x.dtype),
        grid_spec=pltpu.PrefetchScalarGridSpec(
            num_scalar_prefetch=0,
            grid=grid,
            in_specs=[
                pl.BlockSpec((tm, K), lambda i: (i, 0)),      # streamed activations
                pl.BlockSpec((K, n_out), lambda i: (0, 0)),   # resident weights
                pl.BlockSpec((1, n_out), lambda i: (0, 0)),   # resident bias
            ],
            out_specs=pl.BlockSpec((tm, n_out), lambda i: (i, 0)),
        ),
        compiler_params=pltpu.CompilerParams(
            dimension_semantics=("parallel",),
        ),
    )(x, w, b2)

    if n_out != N:
        out = out[:, :N]
    return out


def global_mean_pool(x):
    """x: (B, S, C) -> (B, C); Pallas equivalent of tensor.mean(3).mean(2)."""
    B, S, C = x.shape
    return pl.pallas_call(
        _mean_pool_kernel,
        out_shape=jax.ShapeDtypeStruct((B, C), x.dtype),
    )(x)


# ---------------------------------------------------------------------------
# Weight-norm reparametrization + im2col (parameter / layout plumbing in JAX)
# ---------------------------------------------------------------------------
def wn_conv_weight(v, g, eps=1e-6):
    # v: (Cout, Cin, kh, kw), g: (Cout,)  ->  g * v / ||v||_2 (per out-channel)
    norm = jnp.sqrt(jnp.sum(v * v, axis=(1, 2, 3)) + eps)
    return v * (g / norm)[:, None, None, None]


def wn_linear_weight(v, g, eps=1e-6):
    # v: (Cout, Cin)
    norm = jnp.sqrt(jnp.sum(v * v, axis=1) + eps)
    return v * (g / norm)[:, None]


def im2col(x, kh, kw, stride, padding):
    # x: (B, H, W, C) -> patches (B*Ho*Wo, kh*kw*C), row-major over (dy, dx, c)
    B, H, W, C = x.shape
    if padding:
        x = jnp.pad(x, ((0, 0), (padding, padding), (padding, padding), (0, 0)))
    Hp, Wp = H + 2 * padding, W + 2 * padding
    Ho = (Hp - kh) // stride + 1
    Wo = (Wp - kw) // stride + 1
    cols = []
    for dy in range(kh):
        for dx in range(kw):
            cols.append(x[:, dy:dy + (Ho - 1) * stride + 1:stride,
                          dx:dx + (Wo - 1) * stride + 1:stride, :])
    patches = jnp.concatenate(cols, axis=-1)            # (B, Ho, Wo, kh*kw*C)
    return patches.reshape(B * Ho * Wo, kh * kw * C), (B, Ho, Wo)


def wn_conv2d(x_nhwc, v, g, b, *, stride, padding, negative_slope, mxu_dtype=None):
    w_eff = wn_conv_weight(v, g)                        # (Cout, Cin, kh, kw)
    cout, cin, kh, kw = w_eff.shape
    patches, (B, Ho, Wo) = im2col(x_nhwc, kh, kw, stride, padding)
    w_mat = jnp.transpose(w_eff, (2, 3, 1, 0)).reshape(kh * kw * cin, cout)
    if mxu_dtype is not None:                           # bf16 fast path on v6e/v7x
        patches = patches.astype(mxu_dtype)
        w_mat = w_mat.astype(mxu_dtype)
    y = linear_act(patches, w_mat, b, negative_slope=negative_slope)
    return y.reshape(B, Ho, Wo, cout)


# ---------------------------------------------------------------------------
# Discriminative (svhn): parameters + forward
# ---------------------------------------------------------------------------
def init_discriminative_params(key, num_label=10):
    nf1, nf2 = 64, 128                                  # svhn filter counts
    conv_cfg = [
        # (cin, cout, k, stride, padding)
        (3,   nf1, 3, 1, 1), (nf1, nf1, 3, 1, 1), (nf1, nf1, 3, 2, 1),
        (nf1, nf2, 3, 1, 1), (nf2, nf2, 3, 1, 1), (nf2, nf2, 3, 2, 1),
        (nf2, nf2, 3, 1, 0), (nf2, nf2, 1, 1, 0), (nf2, nf2, 1, 1, 0),
    ]
    keys = jax.random.split(key, 2 * len(conv_cfg) + 2)
    convs = []
    for li, (cin, cout, k, s, p) in enumerate(conv_cfg):
        kv, kb = keys[2 * li], keys[2 * li + 1]
        convs.append(dict(
            v=0.05 * jax.random.normal(kv, (cout, cin, k, k), jnp.float32),
            g=jnp.full((cout,), 1.4, jnp.float32),      # weight_scale
            b=0.05 * jax.random.normal(kb, (cout,), jnp.float32),
            stride=s, padding=p))
    out = dict(
        v=0.1 * jax.random.normal(keys[-2], (num_label, nf2), jnp.float32),
        g=jnp.ones((num_label,), jnp.float32),          # train_scale=True scale
        b=0.05 * jax.random.normal(keys[-1], (num_label,), jnp.float32))
    return dict(convs=convs, out=out)


def discriminative_forward(params, x, *, feat=False, mxu_dtype=None):
    # x: (B, 3, 32, 32) NCHW (PyTorch layout) or flattened (B, 3072)
    if x.ndim == 2:
        x = x.reshape(x.shape[0], 3, 32, 32)
    # TODO(synk): GaussianNoise(0.05) and Dropout2d are train-time stochastic ops;
    # this implements the eval-mode forward (they are identities).
    h = jnp.transpose(x, (0, 2, 3, 1))                  # NHWC
    for c in params['convs']:
        h = wn_conv2d(h, c['v'], c['g'], c['b'], stride=c['stride'],
                      padding=c['padding'], negative_slope=LEAK,
                      mxu_dtype=mxu_dtype)
    B, Ho, Wo, C = h.shape
    feat_vec = global_mean_pool(h.reshape(B, Ho * Wo, C))   # == mean(3).mean(2)
    if feat:
        return feat_vec
    o = params['out']
    w_eff = wn_linear_weight(o['v'], o['g'])            # (num_label, C)
    # lane-dense classifier head: pad out_dim -> 128 inside, slice back outside
    return linear_act(feat_vec, w_eff.T, o['b'], negative_slope=None, pad_out_to=128)


# ---------------------------------------------------------------------------
# Pure-JAX reference (high precision) for correctness checking
# ---------------------------------------------------------------------------
def _ref_forward(params, x):
    h = jnp.transpose(x.reshape(x.shape[0], 3, 32, 32), (0, 2, 3, 1)).astype(jnp.float32)
    for c in params['convs']:
        w = wn_conv_weight(c['v'], c['g'])
        w_hwio = jnp.transpose(w, (2, 3, 1, 0))
        y = jax.lax.conv_general_dilated(
            h, w_hwio, window_strides=(c['stride'], c['stride']),
            padding=[(c['padding'], c['padding'])] * 2,
            dimension_numbers=('NHWC', 'HWIO', 'NHWC'),
            precision=jax.lax.Precision.HIGHEST)
        y = y + c['b']
        h = jnp.where(y > 0, y, LEAK * y)
    feat = jnp.mean(h, axis=(1, 2))
    o = params['out']
    w = wn_linear_weight(o['v'], o['g'])
    return jnp.dot(feat, w.T, precision=jax.lax.Precision.HIGHEST) + o['b']


if __name__ == "__main__":
    key = jax.random.PRNGKey(0)
    kx, kp = jax.random.split(key)

    B, NUM_LABEL = 2, 10
    x = jax.random.normal(kx, (B, 3, 32, 32), jnp.float32)
    params = init_discriminative_params(kp, num_label=NUM_LABEL)

    logits = jax.block_until_ready(discriminative_forward(params, x))
    assert logits.shape == (B, NUM_LABEL), logits.shape

    ref = _ref_forward(params, x)
    assert jnp.allclose(logits, ref, atol=2e-3, rtol=2e-3), \
        float(jnp.max(jnp.abs(logits - ref)))

    # feature path (feat=True) also exercised
    fv = jax.block_until_ready(discriminative_forward(params, x, feat=True))
    assert fv.shape == (B, 128), fv.shape

    print("KERNEL_OK")
</pallas_src>

<mosaic_0001>
module attributes {stable_mosaic.version = 11 : i64} {
  func.func @_linear_act_kernel(%arg0: i32, %arg1: memref<1024x27xf32, #tpu.memory_space<vmem>>, %arg2: memref<27x64xf32, #tpu.memory_space<vmem>>, %arg3: memref<1x64xf32, #tpu.memory_space<vmem>>, %arg4: memref<1024x64xf32, #tpu.memory_space<vmem>>) attributes {dimension_semantics = [#tpu.dimension_semantics<parallel>], iteration_bounds = array<i64: 2>, scalar_prefetch = 0 : i64, scratch_operands = 0 : i64, tpu.core_type = #tpu.core_type<tc>, window_params = [{transform_indices = @transform_0, window_bounds = array<i64: 1024, 27>}, {pipeline_mode = #tpu.pipeline_mode<synchronous>, transform_indices = @transform_1, window_bounds = array<i64: 27, 64>}, {pipeline_mode = #tpu.pipeline_mode<synchronous>, transform_indices = @transform_2, window_bounds = array<i64: 1, 64>}, {transform_indices = @transform_3, window_bounds = array<i64: 1024, 64>}]} {
    %c0 = arith.constant 0 : index
    %c0_0 = arith.constant 0 : index
    %0 = vector.load %arg1[%c0, %c0_0] : memref<1024x27xf32, #tpu.memory_space<vmem>>, vector<1024x27xf32>
    %c0_1 = arith.constant 0 : index
    %c0_2 = arith.constant 0 : index
    %1 = vector.load %arg2[%c0_1, %c0_2] : memref<27x64xf32, #tpu.memory_space<vmem>>, vector<27x64xf32>
    %cst = arith.constant dense<0.000000e+00> : vector<1024x64xf32>
    %2 = tpu.matmul %0, %1, %cst {dimension_numbers = #tpu.dot_dimension_numbers<[1], [0], [0], [1], [0, 0, 1, 1], [], []>} : vector<1024x27xf32>, vector<27x64xf32>, vector<1024x64xf32> -> vector<1024x64xf32>
    %c0_3 = arith.constant 0 : index
    %c0_4 = arith.constant 0 : index
    %3 = vector.load %arg3[%c0_3, %c0_4] : memref<1x64xf32, #tpu.memory_space<vmem>>, vector<1x64xf32>
    %4 = vector.broadcast %3 : vector<1x64xf32> to vector<1024x64xf32>
    %5 = arith.addf %2, %4 : vector<1024x64xf32>
    %cst_5 = arith.constant 0.000000e+00 : f32
    %6 = vector.broadcast %cst_5 : f32 to vector<1024x64xf32>
    %7 = arith.cmpf ogt, %5, %6 : vector<1024x64xf32>
    %cst_6 = arith.constant 2.000000e-01 : f32
    %8 = vector.broadcast %cst_6 : f32 to vector<1024x64xf32>
    %9 = arith.mulf %8, %5 : vector<1024x64xf32>
    %10 = arith.select %7, %5, %9 : vector<1024x64xi1>, vector<1024x64xf32>
    %c0_7 = arith.constant 0 : index
    %c0_8 = arith.constant 0 : index
    %11 = vector.load %arg4[%c0_7, %c0_8] : memref<1024x64xf32, #tpu.memory_space<vmem>>, vector<1024x64xf32>
    tpu.vector_store %arg4[%c0_7, %c0_8], %10 {strides = array<i32>} : memref<1024x64xf32, #tpu.memory_space<vmem>>, vector<1024x64xf32>,
    return
  }
  func.func @transform_0(%arg0: i32) -> (i32, i32) {
    %c0_i32 = arith.constant 0 : i32
    %c0_i32_0 = arith.constant 0 : i32
    return %arg0, %c0_i32 : i32, i32
  }
  func.func @transform_1(%arg0: i32) -> (i32, i32) {
    %c0_i32 = arith.constant 0 : i32
    %c0_i32_0 = arith.constant 0 : i32
    %c0_i32_1 = arith.constant 0 : i32
    return %c0_i32, %c0_i32_0 : i32, i32
  }
  func.func @transform_2(%arg0: i32) -> (i32, i32) {
    %c0_i32 = arith.constant 0 : i32
    %c0_i32_0 = arith.constant 0 : i32
    %c0_i32_1 = arith.constant 0 : i32
    return %c0_i32, %c0_i32_0 : i32, i32
  }
  func.func @transform_3(%arg0: i32) -> (i32, i32) {
    %c0_i32 = arith.constant 0 : i32
    %c0_i32_0 = arith.constant 0 : i32
    return %arg0, %c0_i32 : i32, i32
  }
}

</mosaic_0001>

<llo_original>
// kernel: tpu_custom_call.1
$region0: #{tpu_custom_call.1}
  #allocation0 [shape = 'u32[]', space=smem, size = 0x4, offset = 0x4, fixed_abs, tag = 'smem constant byte address 0x4 - core index']
  #allocation1 [shape = 'u32[72,128]{1,0:T(1,128)}', space=vmem, size = 0x9000, scoped, tag = 'internal scratch']
  %s0 = inlined_call_operand.vmem [shape: f32[2048,27], index: 0, kind: input, shape index: {}]
  %s1 = inlined_call_operand.vmem [shape: f32[27,64], index: 1, kind: input, shape index: {}]
  %s2 = inlined_call_operand.vmem [shape: f32[1,64], index: 2, kind: input, shape index: {}]
  %s3 = inlined_call_operand.vmem [shape: f32[2048,64], index: 3, kind: output, shape index: {}]
  %s4 = sld [smem:[#allocation0]]
  $region45: #{tpu_custom_call.1} parent=0
    _
  %s6 = ssub.s32 1, %s4
  %s7 = scalar_select 0, %s6, %s4
  loop: start=0, step=1, limit=4
  $region2: #{tpu_custom_call.1} parent=0 // loop_pre_header
    _
  $region3: #{tpu_custom_call.1} parent=0 // loop_header
    %s9 = sphi 0, %s13
    %p10 = scmp.ge.s32.totalorder %s9, 4
    %s19 = sphi 0, %s21
    %s22 = sphi 0, %s19
    %s23 = sphi 0, %s22
    %s39 = sphi 0, %s23
    %s43 = sphi 0, %s43
    %s45 = sphi 0, %s43
    %s46 = sphi 0, %s45
    %s60 = sphi 0, %s46
    %s64 = sphi 0, %s64
    %s66 = sphi 0, %s64
    %s67 = sphi 0, %s66
    %s81 = sphi 0, %s67
    %s87 = sphi 0, %s89
    %s90 = sphi 0, %s87
    %s91 = sphi 0, %s90
    %s107 = sphi 0, %s91
  $region4: #{tpu_custom_call.1} parent=0 // loop_header_branch
    %12 = sbr.rel (%p10) target = $region8
  $region5: #{tpu_custom_call.1} parent=0 // loop_body
    %s14 = ssub.s32 %s9, 1
    %s15 = ssub.s32 %s9, 2
    %s16 = sadd.s32 %s9, 1
    %s17 = ssub.s32 %s9, %s16
    %p18 = scmp.eq.s32.totalorder %s17, 0
    %s20 = sadd.s32 %s19, 1
    %s21 = scalar_select %p18, %s19, %s20
    %p24 = pneg %p18
    %p25 = scmp.eq.s32.totalorder %s9, 1
    %p26 = por %p24, %p25
    %p27 = scmp.ne.s32.totalorder %s19, %s22
    %p28 = scmp.eq.s32.totalorder %s9, 0
    %p29 = por %p27, %p28
    %p30 = scmp.ne.s32.totalorder %s19, %s22
    %p31 = scmp.eq.s32.totalorder %s14, 1
    %p32 = por %p30, %p31
    %p33 = scmp.ne.s32.totalorder %s22, %s23
    %p34 = scmp.eq.s32.totalorder %s14, 0
    %p35 = por %p33, %p34
    %p36 = scmp.ne.s32.totalorder %s22, %s23
    %p37 = scmp.eq.s32.totalorder %s15, 1
    %p38 = por %p36, %p37
    %p40 = scmp.ne.s32.totalorder %s23, %s39
    %p41 = scmp.eq.s32.totalorder %s15, 0
    %p42 = por %p40, %p41
    %s44 = sadd.s32 %s43, 1
    %p47 = scmp.eq.s32.totalorder %s9, 1
    %p48 = scmp.ne.s32.totalorder %s43, %s45
    %p49 = scmp.eq.s32.totalorder %s9, 0
    %p50 = por %p48, %p49
    %p51 = scmp.ne.s32.totalorder %s43, %s45
    %p52 = scmp.eq.s32.totalorder %s14, 1
    %p53 = por %p51, %p52
    %p54 = scmp.ne.s32.totalorder %s45, %s46
    %p55 = scmp.eq.s32.totalorder %s14, 0
    %p56 = por %p54, %p55
    %p57 = scmp.ne.s32.totalorder %s45, %s46
    %p58 = scmp.eq.s32.totalorder %s15, 1
    %p59 = por %p57, %p58
    %p61 = scmp.ne.s32.totalorder %s46, %s60
    %p62 = scmp.eq.s32.totalorder %s15, 0
    %p63 = por %p61, %p62
    %s65 = sadd.s32 %s64, 1
    %p68 = scmp.eq.s32.totalorder %s9, 1
    %p69 = scmp.ne.s32.totalorder %s64, %s66
    %p70 = scmp.eq.s32.totalorder %s9, 0
    %p71 = por %p69, %p70
    %p72 = scmp.ne.s32.totalorder %s64, %s66
    %p73 = scmp.eq.s32.totalorder %s14, 1
    %p74 = por %p72, %p73
    %p75 = scmp.ne.s32.totalorder %s66, %s67
    %p76 = scmp.eq.s32.totalorder %s14, 0
    %p77 = por %p75, %p76
    %p78 = scmp.ne.s32.totalorder %s66, %s67
    %p79 = scmp.eq.s32.totalorder %s15, 1
    %p80 = por %p78, %p79
    %p82 = scmp.ne.s32.totalorder %s67, %s81
    %p83 = scmp.eq.s32.totalorder %s15, 0
    %p84 = por %p82, %p83
    %s85 = ssub.s32 %s9, %s16
    %p86 = scmp.eq.s32.totalorder %s85, 0
    %s88 = sadd.s32 %s87, 1
    %s89 = scalar_select %p86, %s87, %s88
    %p92 = pneg %p86
    %p93 = scmp.eq.s32.totalorder %s9, 1
    %p94 = por %p92, %p93
    %p95 = scmp.ne.s32.totalorder %s87, %s90
    %p96 = scmp.eq.s32.totalorder %s9, 0
    %p97 = por %p95, %p96
    %p98 = scmp.ne.s32.totalorder %s87, %s90
    %p99 = scmp.eq.s32.totalorder %s14, 1
    %p100 = por %p98, %p99
    %p101 = scmp.ne.s32.totalorder %s90, %s91
    %p102 = scmp.eq.s32.totalorder %s14, 0
    %p103 = por %p101, %p102
    %p104 = scmp.ne.s32.totalorder %s90, %s91
    %p105 = scmp.eq.s32.totalorder %s15, 1
    %p106 = por %p104, %p105
    %p108 = scmp.ne.s32.totalorder %s91, %s107
    %p109 = scmp.eq.s32.totalorder %s15, 0
    %p110 = por %p108, %p109
    %p111 = scmp.le.s32.totalorder 1, %s9
    %p112 = scmp.lt.s32.totalorder %s9, 3
    %p113 = pnand %p111, %p112
    %p114 = pneg %p113
    // Predicated region
    $region9: #{tpu_custom_call.1} parent=5 // pred_check
      _
    $region10: #{tpu_custom_call.1} parent=5 // pred_check_branch
      %116 = sbr.rel (%p113) target = $region12
    $region11: #{tpu_custom_call.1} parent=5 // pred_region
      %s117 = ssub.s32 %s9, 1
      // Predicated region
      $region13: #{tpu_custom_call.1} parent=11 // pred_check
        %p118 = pneg %p56
      $region14: #{tpu_custom_call.1} parent=11 // pred_check_branch
        %120 = sbr.rel (%p118) target = $region16
      $region15: #{tpu_custom_call.1} parent=11 // pred_region
        _
      $region16: #{tpu_custom_call.1} parent=11 // pred_fallthru
        _
      // Predicated region
      $region17: #{tpu_custom_call.1} parent=11 // pred_check
        %p121 = pneg %p77
      $region18: #{tpu_custom_call.1} parent=11 // pred_check_branch
        %123 = sbr.rel (%p121) target = $region20
      $region19: #{tpu_custom_call.1} parent=11 // pred_region
        _
      $region20: #{tpu_custom_call.1} parent=11 // pred_fallthru
        _
    $region12: #{tpu_custom_call.1} parent=5 // pred_fallthru
      _
    %p124 = scmp.lt.s32.totalorder %s9, 2
    // Predicated region
    $region21: #{tpu_custom_call.1} parent=5 // pred_check
      %p125 = pneg %p124
    $region22: #{tpu_custom_call.1} parent=5 // pred_check_branch
      %127 = sbr.rel (%p125) target = $region24
    $region23: #{tpu_custom_call.1} parent=5 // pred_region
      // Predicated region
      $region25: #{tpu_custom_call.1} parent=23 // pred_check
        %p128 = pneg %p29
      $region26: #{tpu_custom_call.1} parent=23 // pred_check_branch
        %130 = sbr.rel (%p128) target = $region28
      $region27: #{tpu_custom_call.1} parent=23 // pred_region
        %s131 = smul.u32 128, %s9
        %p132 = scmp.lt.s32.totalorder %s131, 255
        %s133 = scalar_select %p132, %s131, 255
        %s134 = smul.addr %s133, 8
        %s135 = scalar_lea.vmem %s0, %s134
        %s136 = smul.u32 128, %s9
      $region28: #{tpu_custom_call.1} parent=23 // pred_fallthru
        _
    $region24: #{tpu_custom_call.1} parent=5 // pred_fallthru
      _
    %p137 = scmp.le.s32.totalorder 1, %s9
    %p138 = scmp.lt.s32.totalorder %s9, 3
    %p139 = pnand %p137, %p138
    %p140 = pneg %p139
    // Predicated region
    $region29: #{tpu_custom_call.1} parent=5 // pred_check
      _
    $region30: #{tpu_custom_call.1} parent=5 // pred_check_branch
      %142 = sbr.rel (%p139) target = $region32
    $region31: #{tpu_custom_call.1} parent=5 // pred_region
      %s143 = ssub.s32 %s9, 1
      %s144 = smul.u32 128, %s14
      %p145 = scmp.lt.s32.totalorder %s144, 255
      %s146 = scalar_select %p145, %s144, 255
      %s147 = smul.addr %s146, 8
      %s148 = scalar_lea.vmem %s0, %s147
      %p149 = pneg %p35
      %p150 = pneg %p32
      %p151 = pneg %p56
      %p152 = pneg %p53
      %p153 = pneg %p77
      %p154 = pneg %p74
      %p155 = pneg %p103
      %p156 = pneg %p100
      %s157 = smul.u32 128, %s14
      %p158 = scmp.lt.s32.totalorder %s157, 255
      %s159 = scalar_select %p158, %s157, 255
      %s160 = smul.addr %s159, 8
      %s161 = scalar_lea.vmem %s3, %s160
      %s162 = smul.u32 128, %s14
      %p163 = scmp.lt.s32.totalorder %s162, 255
      %s164 = scalar_select %p163, %s162, 255
      %s165 = smul.addr %s164, 8
      %s166 = scalar_lea.vmem %s0, %s165
      %s167 = smul.u32 128, %s14
      %s168 = smul.u32 128, %s14
      %p169 = scmp.lt.s32.totalorder %s168, 255
      %s170 = scalar_select %p169, %s168, 255
      %s171 = smul.addr %s170, 8
      %s172 = scalar_lea.vmem %s3, %s171
      %s173 = smul.u32 128, %s14
      %v174 = vld [vmem:[%s166] sm:$0xff]
      %v175 = vld [vmem:[%s166 + $0x8] sm:$0xff]
      %v176 = vld [vmem:[%s166 + $0x10] sm:$0xff]
      %v177 = vld [vmem:[%s166 + $0x18] sm:$0xff]
      %v178 = vld [vmem:[%s166 + $0x20] sm:$0xff]
      %v179 = vld [vmem:[%s166 + $0x28] sm:$0xff]
      %v180 = vld [vmem:[%s166 + $0x30] sm:$0xff]
      %v181 = vld [vmem:[%s166 + $0x38] sm:$0xff]
      %v182 = vld [vmem:[%s166 + $0x40] sm:$0xff]
      %v183 = vld [vmem:[%s166 + $0x48] sm:$0xff]
      %v184 = vld [vmem:[%s166 + $0x50] sm:$0xff]
      %v185 = vld [vmem:[%s166 + $0x58] sm:$0xff]
      %v186 = vld [vmem:[%s166 + $0x60] sm:$0xff]
      %v187 = vld [vmem:[%s166 + $0x68] sm:$0xff]
      %v188 = vld [vmem:[%s166 + $0x70] sm:$0xff]
      %v189 = vld [vmem:[%s166 + $0x78] sm:$0xff]
      %v190 = vld [vmem:[%s166 + $0x80] sm:$0xff]
      %v191 = vld [vmem:[%s166 + $0x88] sm:$0xff]
      %v192 = vld [vmem:[%s166 + $0x90] sm:$0xff]
      %v193 = vld [vmem:[%s166 + $0x98] sm:$0xff]
      %v194 = vld [vmem:[%s166 + $0xa0] sm:$0xff]
      %v195 = vld [vmem:[%s166 + $0xa8] sm:$0xff]
      %v196 = vld [vmem:[%s166 + $0xb0] sm:$0xff]
      %v197 = vld [vmem:[%s166 + $0xb8] sm:$0xff]
      %v198 = vld [vmem:[%s166 + $0xc0] sm:$0xff]
      %v199 = vld [vmem:[%s166 + $0xc8] sm:$0xff]
      %v200 = vld [vmem:[%s166 + $0xd0] sm:$0xff]
      %v201 = vld [vmem:[%s166 + $0xd8] sm:$0xff]
      %v202 = vld [vmem:[%s166 + $0xe0] sm:$0xff]
      %v203 = vld [vmem:[%s166 + $0xe8] sm:$0xff]
      %v204 = vld [vmem:[%s166 + $0xf0] sm:$0xff]
      %v205 = vld [vmem:[%s166 + $0xf8] sm:$0xff]
      %v206 = vld [vmem:[%s166 + $0x100] sm:$0xff]
      %v207 = vld [vmem:[%s166 + $0x108] sm:$0xff]
      %v208 = vld [vmem:[%s166 + $0x110] sm:$0xff]
      %v209 = vld [vmem:[%s166 + $0x118] sm:$0xff]
      %v210 = vld [vmem:[%s166 + $0x120] sm:$0xff]
      %v211 = vld [vmem:[%s166 + $0x128] sm:$0xff]
      %v212 = vld [vmem:[%s166 + $0x130] sm:$0xff]
      %v213 = vld [vmem:[%s166 + $0x138] sm:$0xff]
      %v214 = vld [vmem:[%s166 + $0x140] sm:$0xff]
      %v215 = vld [vmem:[%s166 + $0x148] sm:$0xff]
      %v216 = vld [vmem:[%s166 + $0x150] sm:$0xff]
      %v217 = vld [vmem:[%s166 + $0x158] sm:$0xff]
      %v218 = vld [vmem:[%s166 + $0x160] sm:$0xff]
      %v219 = vld [vmem:[%s166 + $0x168] sm:$0xff]
      %v220 = vld [vmem:[%s166 + $0x170] sm:$0xff]
      %v221 = vld [vmem:[%s166 + $0x178] sm:$0xff]
      %v222 = vld [vmem:[%s166 + $0x180] sm:$0xff]
      %v223 = vld [vmem:[%s166 + $0x188] sm:$0xff]
      %v224 = vld [vmem:[%s166 + $0x190] sm:$0xff]
      %v225 = vld [vmem:[%s166 + $0x198] sm:$0xff]
      %v226 = vld [vmem:[%s166 + $0x1a0] sm:$0xff]
      %v227 = vld [vmem:[%s166 + $0x1a8] sm:$0xff]
      %v228 = vld [vmem:[%s166 + $0x1b0] sm:$0xff]
      %v229 = vld [vmem:[%s166 + $0x1b8] sm:$0xff]
      %v230 = vld [vmem:[%s166 + $0x1c0] sm:$0xff]
      %v231 = vld [vmem:[%s166 + $0x1c8] sm:$0xff]
      %v232 = vld [vmem:[%s166 + $0x1d0] sm:$0xff]
      %v233 = vld [vmem:[%s166 + $0x1d8] sm:$0xff]
      %v234 = vld [vmem:[%s166 + $0x1e0] sm:$0xff]
      %v235 = vld [vmem:[%s166 + $0x1e8] sm:$0xff]
      %v236 = vld [vmem:[%s166 + $0x1f0] sm:$0xff]
      %v237 = vld [vmem:[%s166 + $0x1f8] sm:$0xff]
      %v238 = vld [vmem:[%s166 + $0x200] sm:$0xff]
      %v239 = vld [vmem:[%s166 + $0x208] sm:$0xff]
      %v240 = vld [vmem:[%s166 + $0x210] sm:$0xff]
      %v241 = vld [vmem:[%s166 + $0x218] sm:$0xff]
      %v242 = vld [vmem:[%s166 + $0x220] sm:$0xff]
      %v243 = vld [vmem:[%s166 + $0x228] sm:$0xff]
      %v244 = vld [vmem:[%s166 + $0x230] sm:$0xff]
      %v245 = vld [vmem:[%s166 + $0x238] sm:$0xff]
      %v246 = vld [vmem:[%s166 + $0x240] sm:$0xff]
      %v247 = vld [vmem:[%s166 + $0x248] sm:$0xff]
      %v248 = vld [vmem:[%s166 + $0x250] sm:$0xff]
      %v249 = vld [vmem:[%s166 + $0x258] sm:$0xff]
      %v250 = vld [vmem:[%s166 + $0x260] sm:$0xff]
      %v251 = vld [vmem:[%s166 + $0x268] sm:$0xff]
      %v252 = vld [vmem:[%s166 + $0x270] sm:$0xff]
      %v253 = vld [vmem:[%s166 + $0x278] sm:$0xff]
      %v254 = vld [vmem:[%s166 + $0x280] sm:$0xff]
      %v255 = vld [vmem:[%s166 + $0x288] sm:$0xff]
      %v256 = vld [vmem:[%s166 + $0x290] sm:$0xff]
      %v257 = vld [vmem:[%s166 + $0x298] sm:$0xff]
      %v258 = vld [vmem:[%s166 + $0x2a0] sm:$0xff]
      %v259 = vld [vmem:[%s166 + $0x2a8] sm:$0xff]
      %v260 = vld [vmem:[%s166 + $0x2b0] sm:$0xff]
      %v261 = vld [vmem:[%s166 + $0x2b8] sm:$0xff]
      %v262 = vld [vmem:[%s166 + $0x2c0] sm:$0xff]
      %v263 = vld [vmem:[%s166 + $0x2c8] sm:$0xff]
      %v264 = vld [vmem:[%s166 + $0x2d0] sm:$0xff]
      %v265 = vld [vmem:[%s166 + $0x2d8] sm:$0xff]
      %v266 = vld [vmem:[%s166 + $0x2e0] sm:$0xff]
      %v267 = vld [vmem:[%s166 + $0x2e8] sm:$0xff]
      %v268 = vld [vmem:[%s166 + $0x2f0] sm:$0xff]
      %v269 = vld [vmem:[%s166 + $0x2f8] sm:$0xff]
      %v270 = vld [vmem:[%s166 + $0x300] sm:$0xff]
      %v271 = vld [vmem:[%s166 + $0x308] sm:$0xff]
      %v272 = vld [vmem:[%s166 + $0x310] sm:$0xff]
      %v273 = vld [vmem:[%s166 + $0x318] sm:$0xff]
      %v274 = vld [vmem:[%s166 + $0x320] sm:$0xff]
      %v275 = vld [vmem:[%s166 + $0x328] sm:$0xff]
      %v276 = vld [vmem:[%s166 + $0x330] sm:$0xff]
      %v277 = vld [vmem:[%s166 + $0x338] sm:$0xff]
      %v278 = vld [vmem:[%s166 + $0x340] sm:$0xff]
      %v279 = vld [vmem:[%s166 + $0x348] sm:$0xff]
      %v280 = vld [vmem:[%s166 + $0x350] sm:$0xff]
      %v281 = vld [vmem:[%s166 + $0x358] sm:$0xff]
      %v282 = vld [vmem:[%s166 + $0x360] sm:$0xff]
      %v283 = vld [vmem:[%s166 + $0x368] sm:$0xff]
      %v284 = vld [vmem:[%s166 + $0x370] sm:$0xff]
      %v285 = vld [vmem:[%s166 + $0x378] sm:$0xff]
      %v286 = vld [vmem:[%s166 + $0x380] sm:$0xff]
      %v287 = vld [vmem:[%s166 + $0x388] sm:$0xff]
      %v288 = vld [vmem:[%s166 + $0x390] sm:$0xff]
      %v289 = vld [vmem:[%s166 + $0x398] sm:$0xff]
      %v290 = vld [vmem:[%s166 + $0x3a0] sm:$0xff]
      %v291 = vld [vmem:[%s166 + $0x3a8] sm:$0xff]
      %v292 = vld [vmem:[%s166 + $0x3b0] sm:$0xff]
      %v293 = vld [vmem:[%s166 + $0x3b8] sm:$0xff]
      %v294 = vld [vmem:[%s166 + $0x3c0] sm:$0xff]
      %v295 = vld [vmem:[%s166 + $0x3c8] sm:$0xff]
      %v296 = vld [vmem:[%s166 + $0x3d0] sm:$0xff]
      %v297 = vld [vmem:[%s166 + $0x3d8] sm:$0xff]
      %v298 = vld [vmem:[%s166 + $0x3e0] sm:$0xff]
      %v299 = vld [vmem:[%s166 + $0x3e8] sm:$0xff]
      %v300 = vld [vmem:[%s166 + $0x3f0] sm:$0xff]
      %v301 = vld [vmem:[%s166 + $0x3f8] sm:$0xff]
      %v302 = vld [vmem:[%s1] sm:$0xff]
      %v303 = vld [vmem:[%s1 + $0x8] sm:$0xff]
      %v304 = vld [vmem:[%s1 + $0x10] sm:$0xff]
      %v305 = vld [vmem:[%s1 + $0x18] sm:$0x7]
      %v306 = vld [vmem:[%s2] sm:$0x1]
      %v308 = vperm.slane %v306, 0
      %vm310 = vcmask 220160
      %v312 = vsel %vm310, %v174, 0
      %v315 = vsel %vm310, %v175, 0
      %v318 = vsel %vm310, %v176, 0
      %v321 = vsel %vm310, %v177, 0
      %v324 = vsel %vm310, %v178, 0
      %v327 = vsel %vm310, %v179, 0
      %v330 = vsel %vm310, %v180, 0
      %v333 = vsel %vm310, %v181, 0
      %v336 = vsel %vm310, %v182, 0
      %v339 = vsel %vm310, %v183, 0
      %v342 = vsel %vm310, %v184, 0
      %v345 = vsel %vm310, %v185, 0
      %v348 = vsel %vm310, %v186, 0
      %v351 = vsel %vm310, %v187, 0
      %v354 = vsel %vm310, %v188, 0
      %v357 = vsel %vm310, %v189, 0
      %v360 = vsel %vm310, %v190, 0
      %v363 = vsel %vm310, %v191, 0
      %v366 = vsel %vm310, %v192, 0
      %v369 = vsel %vm310, %v193, 0
      %v372 = vsel %vm310, %v194, 0
      %v375 = vsel %vm310, %v195, 0
      %v378 = vsel %vm310, %v196, 0
      %v381 = vsel %vm310, %v197, 0
      %v384 = vsel %vm310, %v198, 0
      %v387 = vsel %vm310, %v199, 0
      %v390 = vsel %vm310, %v200, 0
      %v393 = vsel %vm310, %v201, 0
      %v396 = vsel %vm310, %v202, 0
      %v399 = vsel %vm310, %v203, 0
      %v402 = vsel %vm310, %v204, 0
      %v405 = vsel %vm310, %v205, 0
      %v408 = vsel %vm310, %v206, 0
      %v411 = vsel %vm310, %v207, 0
      %v414 = vsel %vm310, %v208, 0
      %v417 = vsel %vm310, %v209, 0
      %v420 = vsel %vm310, %v210, 0
      %v423 = vsel %vm310, %v211, 0
      %v426 = vsel %vm310, %v212, 0
      %v429 = vsel %vm310, %v213, 0
      %v432 = vsel %vm310, %v214, 0
      %v435 = vsel %vm310, %v215, 0
      %v438 = vsel %vm310, %v216, 0
      %v441 = vsel %vm310, %v217, 0
      %v444 = vsel %vm310, %v218, 0
      %v447 = vsel %vm310, %v219, 0
      %v450 = vsel %vm310, %v220, 0
      %v453 = vsel %vm310, %v221, 0
      %v456 = vsel %vm310, %v222, 0
      %v459 = vsel %vm310, %v223, 0
      %v462 = vsel %vm310, %v224, 0
      %v465 = vsel %vm310, %v225, 0
      %v468 = vsel %vm310, %v226, 0
      %v471 = vsel %vm310, %v227, 0
      %v474 = vsel %vm310, %v228, 0
      %v477 = vsel %vm310, %v229, 0
      %v480 = vsel %vm310, %v230, 0
      %v483 = vsel %vm310, %v231, 0
      %v486 = vsel %vm310, %v232, 0
      %v489 = vsel %vm310, %v233, 0
      %v492 = vsel %vm310, %v234, 0
      %v495 = vsel %vm310, %v235, 0
      %v498 = vsel %vm310, %v236, 0
      %v501 = vsel %vm310, %v237, 0
      %v504 = vsel %vm310, %v238, 0
      %v507 = vsel %vm310, %v239, 0
      %v510 = vsel %vm310, %v240, 0
      %v513 = vsel %vm310, %v241, 0
      %v516 = vsel %vm310, %v242, 0
      %v519 = vsel %vm310, %v243, 0
      %v522 = vsel %vm310, %v244, 0
      %v525 = vsel %vm310, %v245, 0
      %v528 = vsel %vm310, %v246, 0
      %v531 = vsel %vm310, %v247, 0
      %v534 = vsel %vm310, %v248, 0
      %v537 = vsel %vm310, %v249, 0
      %v540 = vsel %vm310, %v250, 0
      %v543 = vsel %vm310, %v251, 0
      %v546 = vsel %vm310, %v252, 0
      %v549 = vsel %vm310, %v253, 0
      %v552 = vsel %vm310, %v254, 0
      %v555 = vsel %vm310, %v255, 0
      %v558 = vsel %vm310, %v256, 0
      %v561 = vsel %vm310, %v257, 0
      %v564 = vsel %vm310, %v258, 0
      %v567 = vsel %vm310, %v259, 0
      %v570 = vsel %vm310, %v260, 0
      %v573 = vsel %vm310, %v261, 0
      %v576 = vsel %vm310, %v262, 0
      %v579 = vsel %vm310, %v263, 0
      %v582 = vsel %vm310, %v264, 0
      %v585 = vsel %vm310, %v265, 0
      %v588 = vsel %vm310, %v266, 0
      %v591 = vsel %vm310, %v267, 0
      %v594 = vsel %vm310, %v268, 0
      %v597 = vsel %vm310, %v269, 0
      %v600 = vsel %vm310, %v270, 0
      %v603 = vsel %vm310, %v271, 0
      %v606 = vsel %vm310, %v272, 0
      %v609 = vsel %vm310, %v273, 0
      %v612 = vsel %vm310, %v274, 0
      %v615 = vsel %vm310, %v275, 0
      %v618 = vsel %vm310, %v276, 0
      %v621 = vsel %vm310, %v277, 0
      %v624 = vsel %vm310, %v278, 0
      %v627 = vsel %vm310, %v279, 0
      %v630 = vsel %vm310, %v280, 0
      %v633 = vsel %vm310, %v281, 0
      %v636 = vsel %vm310, %v282, 0
      %v639 = vsel %vm310, %v283, 0
      %v642 = vsel %vm310, %v284, 0
      %v645 = vsel %vm310, %v285, 0
      %v648 = vsel %vm310, %v286, 0
      %v651 = vsel %vm310, %v287, 0
      %v654 = vsel %vm310, %v288, 0
      %v657 = vsel %vm310, %v289, 0
      %v660 = vsel %vm310, %v290, 0
      %v663 = vsel %vm310, %v291, 0
      %v666 = vsel %vm310, %v292, 0
      %v669 = vsel %vm310, %v293, 0
      %v672 = vsel %vm310, %v294, 0
      %v675 = vsel %vm310, %v295, 0
      %v678 = vsel %vm310, %v296, 0
      %v681 = vsel %vm310, %v297, 0
      %v684 = vsel %vm310, %v298, 0
      %v687 = vsel %vm310, %v299, 0
      %v690 = vsel %vm310, %v300, 0
      %v693 = vsel %vm310, %v301, 0
      %vm695 = vcmask 1042432
      %v697 = vsel %vm695, %v305, 0
      %699 = vmatpush.msra.mxu0 0.0
      %700 = vmatpush.msra.mxu0 0.0
      %701 = vmatpush.msra.mxu0 0.0
      %702 = vmatpush.msra.mxu0 0.0
      %703 = vmatpush.msra.mxu0 0.0
      %704 = vmatpush.msra.mxu0 0.0
      %705 = vmatpush.msra.mxu0 0.0
      %706 = vmatpush.msra.mxu0 0.0
      %707 = vmatpush.msra.mxu0 0.0
      %708 = vmatpush.msra.mxu0 0.0
      %709 = vmatpush.msra.mxu0 0.0
      %710 = vmatpush.msra.mxu0 0.0
      %711 = vmatpush.msra.mxu0 %v697
      %712 = vmatpush.msra.mxu0 %v304
      %713 = vmatpush.msra.mxu0 %v303
      %714 = vmatpush.msra.mxu0 %v302
      %715 = vmatmul.f32.gmra.mxu0 %v312
      %v716 = vpop.f32.mrf.mxu0
      %v717 = vadd.f32 %v308, %v716
      %718 = vmatmul.f32.gmra.mxu0 %v315
      %v719 = vpop.f32.mrf.mxu0
      %v720 = vadd.f32 %v308, %v719
      %721 = vmatmul.f32.gmra.mxu0 %v318
      %v722 = vpop.f32.mrf.mxu0
      %v723 = vadd.f32 %v308, %v722
      %724 = vmatmul.f32.gmra.mxu0 %v321
      %v725 = vpop.f32.mrf.mxu0
      %v726 = vadd.f32 %v308, %v725
      %727 = vmatmul.f32.gmra.mxu0 %v324
      %v728 = vpop.f32.mrf.mxu0
      %v729 = vadd.f32 %v308, %v728
      %730 = vmatmul.f32.gmra.mxu0 %v327
      %v731 = vpop.f32.mrf.mxu0
      %v732 = vadd.f32 %v308, %v731
      %733 = vmatmul.f32.gmra.mxu0 %v330
      %v734 = vpop.f32.mrf.mxu0
      %v735 = vadd.f32 %v308, %v734
      %736 = vmatmul.f32.gmra.mxu0 %v333
      %v737 = vpop.f32.mrf.mxu0
      %v738 = vadd.f32 %v308, %v737
      %739 = vmatmul.f32.gmra.mxu0 %v336
      %v740 = vpop.f32.mrf.mxu0
      %v741 = vadd.f32 %v308, %v740
      %742 = vmatmul.f32.gmra.mxu0 %v339
      %v743 = vpop.f32.mrf.mxu0
      %v744 = vadd.f32 %v308, %v743
      %745 = vmatmul.f32.gmra.mxu0 %v342
      %v746 = vpop.f32.mrf.mxu0
      %v747 = vadd.f32 %v308, %v746
      %748 = vmatmul.f32.gmra.mxu0 %v345
      %v749 = vpop.f32.mrf.mxu0
      %v750 = vadd.f32 %v308, %v749
      %751 = vmatmul.f32.gmra.mxu0 %v348
      %v752 = vpop.f32.mrf.mxu0
      %v753 = vadd.f32 %v308, %v752
      %754 = vmatmul.f32.gmra.mxu0 %v351
      %v755 = vpop.f32.mrf.mxu0
      %v756 = vadd.f32 %v308, %v755
      %757 = vmatmul.f32.gmra.mxu0 %v354
      %v758 = vpop.f32.mrf.mxu0
      %v759 = vadd.f32 %v308, %v758
      %760 = vmatmul.f32.gmra.mxu0 %v357
      %v761 = vpop.f32.mrf.mxu0
      %v762 = vadd.f32 %v308, %v761
      %763 = vmatmul.f32.gmra.mxu0 %v360
      %v764 = vpop.f32.mrf.mxu0
      %v765 = vadd.f32 %v308, %v764
      %766 = vmatmul.f32.gmra.mxu0 %v363
      %v767 = vpop.f32.mrf.mxu0
      %v768 = vadd.f32 %v308, %v767
      %769 = vmatmul.f32.gmra.mxu0 %v366
      %v770 = vpop.f32.mrf.mxu0
      %v771 = vadd.f32 %v308, %v770
      %772 = vmatmul.f32.gmra.mxu0 %v369
      %v773 = vpop.f32.mrf.mxu0
      %v774 = vadd.f32 %v308, %v773
      %775 = vmatmul.f32.gmra.mxu0 %v372
      %v776 = vpop.f32.mrf.mxu0
      %v777 = vadd.f32 %v308, %v776
      %778 = vmatmul.f32.gmra.mxu0 %v375
      %v779 = vpop.f32.mrf.mxu0
      %v780 = vadd.f32 %v308, %v779
      %781 = vmatmul.f32.gmra.mxu0 %v378
      %v782 = vpop.f32.mrf.mxu0
      %v783 = vadd.f32 %v308, %v782
      %784 = vmatmul.f32.gmra.mxu0 %v381
      %v785 = vpop.f32.mrf.mxu0
      %v786 = vadd.f32 %v308, %v785
      %787 = vmatmul.f32.gmra.mxu0 %v384
      %v788 = vpop.f32.mrf.mxu0
      %v789 = vadd.f32 %v308, %v788
      %790 = vmatmul.f32.gmra.mxu0 %v387
      %v791 = vpop.f32.mrf.mxu0
      %v792 = vadd.f32 %v308, %v791
      %793 = vmatmul.f32.gmra.mxu0 %v390
      %v794 = vpop.f32.mrf.mxu0
      %v795 = vadd.f32 %v308, %v794
      %796 = vmatmul.f32.gmra.mxu0 %v393
      %v797 = vpop.f32.mrf.mxu0
      %v798 = vadd.f32 %v308, %v797
      %799 = vmatmul.f32.gmra.mxu0 %v396
      %v800 = vpop.f32.mrf.mxu0
      %v801 = vadd.f32 %v308, %v800
      %802 = vmatmul.f32.gmra.mxu0 %v399
      %v803 = vpop.f32.mrf.mxu0
      %v804 = vadd.f32 %v308, %v803
      %805 = vmatmul.f32.gmra.mxu0 %v402
      %v806 = vpop.f32.mrf.mxu0
      %v807 = vadd.f32 %v308, %v806
      %808 = vmatmul.f32.gmra.mxu0 %v405
      %v809 = vpop.f32.mrf.mxu0
      %v810 = vadd.f32 %v308, %v809
      %811 = vmatmul.f32.gmra.mxu0 %v408
      %v812 = vpop.f32.mrf.mxu0
      %v813 = vadd.f32 %v308, %v812
      %814 = vmatmul.f32.gmra.mxu0 %v411
      %v815 = vpop.f32.mrf.mxu0
      %v816 = vadd.f32 %v308, %v815
      %817 = vmatmul.f32.gmra.mxu0 %v414
      %v818 = vpop.f32.mrf.mxu0
      %v819 = vadd.f32 %v308, %v818
      %820 = vmatmul.f32.gmra.mxu0 %v417
      %v821 = vpop.f32.mrf.mxu0
      %v822 = vadd.f32 %v308, %v821
      %823 = vmatmul.f32.gmra.mxu0 %v420
      %v824 = vpop.f32.mrf.mxu0
      %v825 = vadd.f32 %v308, %v824
      %826 = vmatmul.f32.gmra.mxu0 %v423
      %v827 = vpop.f32.mrf.mxu0
      %v828 = vadd.f32 %v308, %v827
      %829 = vmatmul.f32.gmra.mxu0 %v426
      %v830 = vpop.f32.mrf.mxu0
      %v831 = vadd.f32 %v308, %v830
      %832 = vmatmul.f32.gmra.mxu0 %v429
      %v833 = vpop.f32.mrf.mxu0
      %v834 = vadd.f32 %v308, %v833
      %835 = vmatmul.f32.gmra.mxu0 %v432
      %v836 = vpop.f32.mrf.mxu0
      %v837 = vadd.f32 %v308, %v836
      %838 = vmatmul.f32.gmra.mxu0 %v435
      %v839 = vpop.f32.mrf.mxu0
      %v840 = vadd.f32 %v308, %v839
      %841 = vmatmul.f32.gmra.mxu0 %v438
      %v842 = vpop.f32.mrf.mxu0
      %v843 = vadd.f32 %v308, %v842
      %844 = vmatmul.f32.gmra.mxu0 %v441
      %v845 = vpop.f32.mrf.mxu0
      %v846 = vadd.f32 %v308, %v845
      %847 = vmatmul.f32.gmra.mxu0 %v444
      %v848 = vpop.f32.mrf.mxu0
      %v849 = vadd.f32 %v308, %v848
      %850 = vmatmul.f32.gmra.mxu0 %v447
      %v851 = vpop.f32.mrf.mxu0
      %v852 = vadd.f32 %v308, %v851
      %853 = vmatmul.f32.gmra.mxu0 %v450
      %v854 = vpop.f32.mrf.mxu0
      %v855 = vadd.f32 %v308, %v854
      %856 = vmatmul.f32.gmra.mxu0 %v453
      %v857 = vpop.f32.mrf.mxu0
      %v858 = vadd.f32 %v308, %v857
      %859 = vmatmul.f32.gmra.mxu0 %v456
      %v860 = vpop.f32.mrf.mxu0
      %v861 = vadd.f32 %v308, %v860
      %862 = vmatmul.f32.gmra.mxu0 %v459
      %v863 = vpop.f32.mrf.mxu0
      %v864 = vadd.f32 %v308, %v863
      %865 = vmatmul.f32.gmra.mxu0 %v462
      %v866 = vpop.f32.mrf.mxu0
      %v867 = vadd.f32 %v308, %v866
      %868 = vmatmul.f32.gmra.mxu0 %v465
      %v869 = vpop.f32.mrf.mxu0
      %v870 = vadd.f32 %v308, %v869
      %871 = vmatmul.f32.gmra.mxu0 %v468
      %v872 = vpop.f32.mrf.mxu0
      %v873 = vadd.f32 %v308, %v872
      %874 = vmatmul.f32.gmra.mxu0 %v471
      %v875 = vpop.f32.mrf.mxu0
      %v876 = vadd.f32 %v308, %v875
      %877 = vmatmul.f32.gmra.mxu0 %v474
      %v878 = vpop.f32.mrf.mxu0
      %v879 = vadd.f32 %v308, %v878
      %880 = vmatmul.f32.gmra.mxu0 %v477
      %v881 = vpop.f32.mrf.mxu0
      %v882 = vadd.f32 %v308, %v881
      %883 = vmatmul.f32.gmra.mxu0 %v480
      %v884 = vpop.f32.mrf.mxu0
      %v885 = vadd.f32 %v308, %v884
      %886 = vmatmul.f32.gmra.mxu0 %v483
      %v887 = vpop.f32.mrf.mxu0
      %v888 = vadd.f32 %v308, %v887
      %889 = vmatmul.f32.gmra.mxu0 %v486
      %v890 = vpop.f32.mrf.mxu0
      %v891 = vadd.f32 %v308, %v890
      %892 = vmatmul.f32.gmra.mxu0 %v489
      %v893 = vpop.f32.mrf.mxu0
      %v894 = vadd.f32 %v308, %v893
      %895 = vmatmul.f32.gmra.mxu0 %v492
      %v896 = vpop.f32.mrf.mxu0
      %v897 = vadd.f32 %v308, %v896
      %898 = vmatmul.f32.gmra.mxu0 %v495
      %v899 = vpop.f32.mrf.mxu0
      %v900 = vadd.f32 %v308, %v899
      %901 = vmatmul.f32.gmra.mxu0 %v498
      %v902 = vpop.f32.mrf.mxu0
      %v903 = vadd.f32 %v308, %v902
      %904 = vmatmul.f32.gmra.mxu0 %v501
      %v905 = vpop.f32.mrf.mxu0
      %v906 = vadd.f32 %v308, %v905
      %907 = vmatmul.f32.gmra.mxu0 %v504
      %v908 = vpop.f32.mrf.mxu0
      %v909 = vadd.f32 %v308, %v908
      %910 = vmatmul.f32.gmra.mxu0 %v507
      %v911 = vpop.f32.mrf.mxu0
      %v912 = vadd.f32 %v308, %v911
      %913 = vmatmul.f32.gmra.mxu0 %v510
      %v914 = vpop.f32.mrf.mxu0
      %v915 = vadd.f32 %v308, %v914
      %916 = vmatmul.f32.gmra.mxu0 %v513
      %v917 = vpop.f32.mrf.mxu0
      %v918 = vadd.f32 %v308, %v917
      %919 = vmatmul.f32.gmra.mxu0 %v516
      %v920 = vpop.f32.mrf.mxu0
      %v921 = vadd.f32 %v308, %v920
      %922 = vmatmul.f32.gmra.mxu0 %v519
      %v923 = vpop.f32.mrf.mxu0
      %v924 = vadd.f32 %v308, %v923
      %925 = vmatmul.f32.gmra.mxu0 %v522
      %v926 = vpop.f32.mrf.mxu0
      %v927 = vadd.f32 %v308, %v926
      %928 = vmatmul.f32.gmra.mxu0 %v525
      %v929 = vpop.f32.mrf.mxu0
      %v930 = vadd.f32 %v308, %v929
      %931 = vmatmul.f32.gmra.mxu0 %v528
      %v932 = vpop.f32.mrf.mxu0
      %v933 = vadd.f32 %v308, %v932
      %934 = vmatmul.f32.gmra.mxu0 %v531
      %v935 = vpop.f32.mrf.mxu0
      %v936 = vadd.f32 %v308, %v935
      %937 = vmatmul.f32.gmra.mxu0 %v534
      %v938 = vpop.f32.mrf.mxu0
      %v939 = vadd.f32 %v308, %v938
      %940 = vmatmul.f32.gmra.mxu0 %v537
      %v941 = vpop.f32.mrf.mxu0
      %v942 = vadd.f32 %v308, %v941
      %943 = vmatmul.f32.gmra.mxu0 %v540
      %v944 = vpop.f32.mrf.mxu0
      %v945 = vadd.f32 %v308, %v944
      %946 = vmatmul.f32.gmra.mxu0 %v543
      %v947 = vpop.f32.mrf.mxu0
      %v948 = vadd.f32 %v308, %v947
      %949 = vmatmul.f32.gmra.mxu0 %v546
      %v950 = vpop.f32.mrf.mxu0
      %v951 = vadd.f32 %v308, %v950
      %952 = vmatmul.f32.gmra.mxu0 %v549
      %v953 = vpop.f32.mrf.mxu0
      %v954 = vadd.f32 %v308, %v953
      %955 = vmatmul.f32.gmra.mxu0 %v552
      %v956 = vpop.f32.mrf.mxu0
      %v957 = vadd.f32 %v308, %v956
      %958 = vmatmul.f32.gmra.mxu0 %v555
      %v959 = vpop.f32.mrf.mxu0
      %v960 = vadd.f32 %v308, %v959
      %961 = vmatmul.f32.gmra.mxu0 %v558
      %v962 = vpop.f32.mrf.mxu0
      %v963 = vadd.f32 %v308, %v962
      %964 = vmatmul.f32.gmra.mxu0 %v561
      %v965 = vpop.f32.mrf.mxu0
      %v966 = vadd.f32 %v308, %v965
      %967 = vmatmul.f32.gmra.mxu0 %v564
      %v968 = vpop.f32.mrf.mxu0
      %v969 = vadd.f32 %v308, %v968
      %970 = vmatmul.f32.gmra.mxu0 %v567
      %v971 = vpop.f32.mrf.mxu0
      %v972 = vadd.f32 %v308, %v971
      %973 = vmatmul.f32.gmra.mxu0 %v570
      %v974 = vpop.f32.mrf.mxu0
      %v975 = vadd.f32 %v308, %v974
      %976 = vmatmul.f32.gmra.mxu0 %v573
      %v977 = vpop.f32.mrf.mxu0
      %v978 = vadd.f32 %v308, %v977
      %979 = vmatmul.f32.gmra.mxu0 %v576
      %v980 = vpop.f32.mrf.mxu0
      %v981 = vadd.f32 %v308, %v980
      %982 = vmatmul.f32.gmra.mxu0 %v579
      %v983 = vpop.f32.mrf.mxu0
      %v984 = vadd.f32 %v308, %v983
      %985 = vmatmul.f32.gmra.mxu0 %v582
      %v986 = vpop.f32.mrf.mxu0
      %v987 = vadd.f32 %v308, %v986
      %988 = vmatmul.f32.gmra.mxu0 %v585
      %v989 = vpop.f32.mrf.mxu0
      %v990 = vadd.f32 %v308, %v989
      %991 = vmatmul.f32.gmra.mxu0 %v588
      %v992 = vpop.f32.mrf.mxu0
      %v993 = vadd.f32 %v308, %v992
      %994 = vmatmul.f32.gmra.mxu0 %v591
      %v995 = vpop.f32.mrf.mxu0
      %v996 = vadd.f32 %v308, %v995
      %997 = vmatmul.f32.gmra.mxu0 %v594
      %v998 = vpop.f32.mrf.mxu0
      %v999 = vadd.f32 %v308, %v998
      %1000 = vmatmul.f32.gmra.mxu0 %v597
      %v1001 = vpop.f32.mrf.mxu0
      %v1002 = vadd.f32 %v308, %v1001
      %1003 = vmatmul.f32.gmra.mxu0 %v600
      %v1004 = vpop.f32.mrf.mxu0
      %v1005 = vadd.f32 %v308, %v1004
      %1006 = vmatmul.f32.gmra.mxu0 %v603
      %v1007 = vpop.f32.mrf.mxu0
      %v1008 = vadd.f32 %v308, %v1007
      %1009 = vmatmul.f32.gmra.mxu0 %v606
      %v1010 = vpop.f32.mrf.mxu0
      %v1011 = vadd.f32 %v308, %v1010
      %1012 = vmatmul.f32.gmra.mxu0 %v609
      %v1013 = vpop.f32.mrf.mxu0
      %v1014 = vadd.f32 %v308, %v1013
      %1015 = vmatmul.f32.gmra.mxu0 %v612
      %v1016 = vpop.f32.mrf.mxu0
      %v1017 = vadd.f32 %v308, %v1016
      %1018 = vmatmul.f32.gmra.mxu0 %v615
      %v1019 = vpop.f32.mrf.mxu0
      %v1020 = vadd.f32 %v308, %v1019
      %1021 = vmatmul.f32.gmra.mxu0 %v618
      %v1022 = vpop.f32.mrf.mxu0
      %v1023 = vadd.f32 %v308, %v1022
      %1024 = vmatmul.f32.gmra.mxu0 %v621
      %v1025 = vpop.f32.mrf.mxu0
      %v1026 = vadd.f32 %v308, %v1025
      %1027 = vmatmul.f32.gmra.mxu0 %v624
      %v1028 = vpop.f32.mrf.mxu0
      %v1029 = vadd.f32 %v308, %v1028
      %1030 = vmatmul.f32.gmra.mxu0 %v627
      %v1031 = vpop.f32.mrf.mxu0
      %v1032 = vadd.f32 %v308, %v1031
      %1033 = vmatmul.f32.gmra.mxu0 %v630
      %v1034 = vpop.f32.mrf.mxu0
      %v1035 = vadd.f32 %v308, %v1034
      %1036 = vmatmul.f32.gmra.mxu0 %v633
      %v1037 = vpop.f32.mrf.mxu0
      %v1038 = vadd.f32 %v308, %v1037
      %1039 = vmatmul.f32.gmra.mxu0 %v636
      %v1040 = vpop.f32.mrf.mxu0
      %v1041 = vadd.f32 %v308, %v1040
      %1042 = vmatmul.f32.gmra.mxu0 %v639
      %v1043 = vpop.f32.mrf.mxu0
      %v1044 = vadd.f32 %v308, %v1043
      %1045 = vmatmul.f32.gmra.mxu0 %v642
      %v1046 = vpop.f32.mrf.mxu0
      %v1047 = vadd.f32 %v308, %v1046
      %1048 = vmatmul.f32.gmra.mxu0 %v645
      %v1049 = vpop.f32.mrf.mxu0
      %v1050 = vadd.f32 %v308, %v1049
      %1051 = vmatmul.f32.gmra.mxu0 %v648
      %v1052 = vpop.f32.mrf.mxu0
      %v1053 = vadd.f32 %v308, %v1052
      %1054 = vmatmul.f32.gmra.mxu0 %v651
      %v1055 = vpop.f32.mrf.mxu0
      %v1056 = vadd.f32 %v308, %v1055
      %1057 = vmatmul.f32.gmra.mxu0 %v654
      %v1058 = vpop.f32.mrf.mxu0
      %v1059 = vadd.f32 %v308, %v1058
      %1060 = vmatmul.f32.gmra.mxu0 %v657
      %v1061 = vpop.f32.mrf.mxu0
      %v1062 = vadd.f32 %v308, %v1061
      %1063 = vmatmul.f32.gmra.mxu0 %v660
      %v1064 = vpop.f32.mrf.mxu0
      %v1065 = vadd.f32 %v308, %v1064
      %1066 = vmatmul.f32.gmra.mxu0 %v663
      %v1067 = vpop.f32.mrf.mxu0
      %v1068 = vadd.f32 %v308, %v1067
      %1069 = vmatmul.f32.gmra.mxu0 %v666
      %v1070 = vpop.f32.mrf.mxu0
      %v1071 = vadd.f32 %v308, %v1070
      %1072 = vmatmul.f32.gmra.mxu0 %v669
      %v1073 = vpop.f32.mrf.mxu0
      %v1074 = vadd.f32 %v308, %v1073
      %1075 = vmatmul.f32.gmra.mxu0 %v672
      %v1076 = vpop.f32.mrf.mxu0
      %v1077 = vadd.f32 %v308, %v1076
      %1078 = vmatmul.f32.gmra.mxu0 %v675
      %v1079 = vpop.f32.mrf.mxu0
      %v1080 = vadd.f32 %v308, %v1079
      %1081 = vmatmul.f32.gmra.mxu0 %v678
      %v1082 = vpop.f32.mrf.mxu0
      %v1083 = vadd.f32 %v308, %v1082
      %1084 = vmatmul.f32.gmra.mxu0 %v681
      %v1085 = vpop.f32.mrf.mxu0
      %v1086 = vadd.f32 %v308, %v1085
      %1087 = vmatmul.f32.gmra.mxu0 %v684
      %v1088 = vpop.f32.mrf.mxu0
      %v1089 = vadd.f32 %v308, %v1088
      %1090 = vmatmul.f32.gmra.mxu0 %v687
      %v1091 = vpop.f32.mrf.mxu0
      %v1092 = vadd.f32 %v308, %v1091
      %1093 = vmatmul.f32.gmra.mxu0 %v690
      %v1094 = vpop.f32.mrf.mxu0
      %v1095 = vadd.f32 %v308, %v1094
      %1096 = vmatmul.f32.gmra.mxu0 %v693
      %v1097 = vpop.f32.mrf.mxu0
      %v1098 = vadd.f32 %v308, %v1097
      %1099 = vdwg.mxu0
      %vm1100 = vcmp.gt.f32.partialorder %v717, 0.0
      %vm1101 = vcmp.gt.f32.partialorder %v720, 0.0
      %vm1102 = vcmp.gt.f32.partialorder %v723, 0.0
      %vm1103 = vcmp.gt.f32.partialorder %v726, 0.0
      %vm1104 = vcmp.gt.f32.partialorder %v729, 0.0
      %vm1105 = vcmp.gt.f32.partialorder %v732, 0.0
      %vm1106 = vcmp.gt.f32.partialorder %v735, 0.0
      %vm1107 = vcmp.gt.f32.partialorder %v738, 0.0
      %vm1108 = vcmp.gt.f32.partialorder %v741, 0.0
      %vm1109 = vcmp.gt.f32.partialorder %v744, 0.0
      %vm1110 = vcmp.gt.f32.partialorder %v747, 0.0
      %vm1111 = vcmp.gt.f32.partialorder %v750, 0.0
      %vm1112 = vcmp.gt.f32.partialorder %v753, 0.0
      %vm1113 = vcmp.gt.f32.partialorder %v756, 0.0
      %vm1114 = vcmp.gt.f32.partialorder %v759, 0.0
      %vm1115 = vcmp.gt.f32.partialorder %v762, 0.0
      %vm1116 = vcmp.gt.f32.partialorder %v765, 0.0
      %vm1117 = vcmp.gt.f32.partialorder %v768, 0.0
      %vm1118 = vcmp.gt.f32.partialorder %v771, 0.0
      %vm1119 = vcmp.gt.f32.partialorder %v774, 0.0
      %vm1120 = vcmp.gt.f32.partialorder %v777, 0.0
      %vm1121 = vcmp.gt.f32.partialorder %v780, 0.0
      %vm1122 = vcmp.gt.f32.partialorder %v783, 0.0
      %vm1123 = vcmp.gt.f32.partialorder %v786, 0.0
      %vm1124 = vcmp.gt.f32.partialorder %v789, 0.0
      %vm1125 = vcmp.gt.f32.partialorder %v792, 0.0
      %vm1126 = vcmp.gt.f32.partialorder %v795, 0.0
      %vm1127 = vcmp.gt.f32.partialorder %v798, 0.0
      %vm1128 = vcmp.gt.f32.partialorder %v801, 0.0
      %vm1129 = vcmp.gt.f32.partialorder %v804, 0.0
      %vm1130 = vcmp.gt.f32.partialorder %v807, 0.0
      %vm1131 = vcmp.gt.f32.partialorder %v810, 0.0
      %vm1132 = vcmp.gt.f32.partialorder %v813, 0.0
      %vm1133 = vcmp.gt.f32.partialorder %v816, 0.0
      %vm1134 = vcmp.gt.f32.partialorder %v819, 0.0
      %vm1135 = vcmp.gt.f32.partialorder %v822, 0.0
      %vm1136 = vcmp.gt.f32.partialorder %v825, 0.0
      %vm1137 = vcmp.gt.f32.partialorder %v828, 0.0
      %vm1138 = vcmp.gt.f32.partialorder %v831, 0.0
      %vm1139 = vcmp.gt.f32.partialorder %v834, 0.0
      %vm1140 = vcmp.gt.f32.partialorder %v837, 0.0
      %vm1141 = vcmp.gt.f32.partialorder %v840, 0.0
      %vm1142 = vcmp.gt.f32.partialorder %v843, 0.0
      %vm1143 = vcmp.gt.f32.partialorder %v846, 0.0
      %vm1144 = vcmp.gt.f32.partialorder %v849, 0.0
      %vm1145 = vcmp.gt.f32.partialorder %v852, 0.0
      %vm1146 = vcmp.gt.f32.partialorder %v855, 0.0
      %vm1147 = vcmp.gt.f32.partialorder %v858, 0.0
      %vm1148 = vcmp.gt.f32.partialorder %v861, 0.0
      %vm1149 = vcmp.gt.f32.partialorder %v864, 0.0
      %vm1150 = vcmp.gt.f32.partialorder %v867, 0.0
      %vm1151 = vcmp.gt.f32.partialorder %v870, 0.0
      %vm1152 = vcmp.gt.f32.partialorder %v873, 0.0
      %vm1153 = vcmp.gt.f32.partialorder %v876, 0.0
      %vm1154 = vcmp.gt.f32.partialorder %v879, 0.0
      %vm1155 = vcmp.gt.f32.partialorder %v882, 0.0
      %vm1156 = vcmp.gt.f32.partialorder %v885, 0.0
      %vm1157 = vcmp.gt.f32.partialorder %v888, 0.0
      %vm1158 = vcmp.gt.f32.partialorder %v891, 0.0
      %vm1159 = vcmp.gt.f32.partialorder %v894, 0.0
      %vm1160 = vcmp.gt.f32.partialorder %v897, 0.0
      %vm1161 = vcmp.gt.f32.partialorder %v900, 0.0
      %vm1162 = vcmp.gt.f32.partialorder %v903, 0.0
      %vm1163 = vcmp.gt.f32.partialorder %v906, 0.0
      %vm1164 = vcmp.gt.f32.partialorder %v909, 0.0
      %vm1165 = vcmp.gt.f32.partialorder %v912, 0.0
      %vm1166 = vcmp.gt.f32.partialorder %v915, 0.0
      %vm1167 = vcmp.gt.f32.partialorder %v918, 0.0
      %vm1168 = vcmp.gt.f32.partialorder %v921, 0.0
      %vm1169 = vcmp.gt.f32.partialorder %v924, 0.0
      %vm1170 = vcmp.gt.f32.partialorder %v927, 0.0
      %vm1171 = vcmp.gt.f32.partialorder %v930, 0.0
      %vm1172 = vcmp.gt.f32.partialorder %v933, 0.0
      %vm1173 = vcmp.gt.f32.partialorder %v936, 0.0
      %vm1174 = vcmp.gt.f32.partialorder %v939, 0.0
      %vm1175 = vcmp.gt.f32.partialorder %v942, 0.0
      %vm1176 = vcmp.gt.f32.partialorder %v945, 0.0
      %vm1177 = vcmp.gt.f32.partialorder %v948, 0.0
      %vm1178 = vcmp.gt.f32.partialorder %v951, 0.0
      %vm1179 = vcmp.gt.f32.partialorder %v954, 0.0
      %vm1180 = vcmp.gt.f32.partialorder %v957, 0.0
      %vm1181 = vcmp.gt.f32.partialorder %v960, 0.0
      %vm1182 = vcmp.gt.f32.partialorder %v963, 0.0
      %vm1183 = vcmp.gt.f32.partialorder %v966, 0.0
      %vm1184 = vcmp.gt.f32.partialorder %v969, 0.0
      %vm1185 = vcmp.gt.f32.partialorder %v972, 0.0
      %vm1186 = vcmp.gt.f32.partialorder %v975, 0.0
      %vm1187 = vcmp.gt.f32.partialorder %v978, 0.0
      %vm1188 = vcmp.gt.f32.partialorder %v981, 0.0
      %vm1189 = vcmp.gt.f32.partialorder %v984, 0.0
      %vm1190 = vcmp.gt.f32.partialorder %v987, 0.0
      %vm1191 = vcmp.gt.f32.partialorder %v990, 0.0
      %vm1192 = vcmp.gt.f32.partialorder %v993, 0.0
      %vm1193 = vcmp.gt.f32.partialorder %v996, 0.0
      %vm1194 = vcmp.gt.f32.partialorder %v999, 0.0
      %vm1195 = vcmp.gt.f32.partialorder %v1002, 0.0
      %vm1196 = vcmp.gt.f32.partialorder %v1005, 0.0
      %vm1197 = vcmp.gt.f32.partialorder %v1008, 0.0
      %vm1198 = vcmp.gt.f32.partialorder %v1011, 0.0
      %vm1199 = vcmp.gt.f32.partialorder %v1014, 0.0
      %vm1200 = vcmp.gt.f32.partialorder %v1017, 0.0
      %vm1201 = vcmp.gt.f32.partialorder %v1020, 0.0
      %vm1202 = vcmp.gt.f32.partialorder %v1023, 0.0
      %vm1203 = vcmp.gt.f32.partialorder %v1026, 0.0
      %vm1204 = vcmp.gt.f32.partialorder %v1029, 0.0
      %vm1205 = vcmp.gt.f32.partialorder %v1032, 0.0
      %vm1206 = vcmp.gt.f32.partialorder %v1035, 0.0
      %vm1207 = vcmp.gt.f32.partialorder %v1038, 0.0
      %vm1208 = vcmp.gt.f32.partialorder %v1041, 0.0
      %vm1209 = vcmp.gt.f32.partialorder %v1044, 0.0
      %vm1210 = vcmp.gt.f32.partialorder %v1047, 0.0
      %vm1211 = vcmp.gt.f32.partialorder %v1050, 0.0
      %vm1212 = vcmp.gt.f32.partialorder %v1053, 0.0
      %vm1213 = vcmp.gt.f32.partialorder %v1056, 0.0
      %vm1214 = vcmp.gt.f32.partialorder %v1059, 0.0
      %vm1215 = vcmp.gt.f32.partialorder %v1062, 0.0
      %vm1216 = vcmp.gt.f32.partialorder %v1065, 0.0
      %vm1217 = vcmp.gt.f32.partialorder %v1068, 0.0
      %vm1218 = vcmp.gt.f32.partialorder %v1071, 0.0
      %vm1219 = vcmp.gt.f32.partialorder %v1074, 0.0
      %vm1220 = vcmp.gt.f32.partialorder %v1077, 0.0
      %vm1221 = vcmp.gt.f32.partialorder %v1080, 0.0
      %vm1222 = vcmp.gt.f32.partialorder %v1083, 0.0
      %vm1223 = vcmp.gt.f32.partialorder %v1086, 0.0
      %vm1224 = vcmp.gt.f32.partialorder %v1089, 0.0
      %vm1225 = vcmp.gt.f32.partialorder %v1092, 0.0
      %vm1226 = vcmp.gt.f32.partialorder %v1095, 0.0
      %vm1227 = vcmp.gt.f32.partialorder %v1098, 0.0
      %v1228 = vmul.f32 %v717, 0.2
      %v1229 = vmul.f32 %v720, 0.2
      %v1230 = vmul.f32 %v723, 0.2
      %v1231 = vmul.f32 %v726, 0.2
      %v1232 = vmul.f32 %v729, 0.2
      %v1233 = vmul.f32 %v732, 0.2
      %v1234 = vmul.f32 %v735, 0.2
      %v1235 = vmul.f32 %v738, 0.2
      %v1236 = vmul.f32 %v741, 0.2
      %v1237 = vmul.f32 %v744, 0.2
      %v1238 = vmul.f32 %v747, 0.2
      %v1239 = vmul.f32 %v750, 0.2
      %v1240 = vmul.f32 %v753, 0.2
      %v1241 = vmul.f32 %v756, 0.2
      %v1242 = vmul.f32 %v759, 0.2
      %v1243 = vmul.f32 %v762, 0.2
      %v1244 = vmul.f32 %v765, 0.2
      %v1245 = vmul.f32 %v768, 0.2
      %v1246 = vmul.f32 %v771, 0.2
      %v1247 = vmul.f32 %v774, 0.2
      %v1248 = vmul.f32 %v777, 0.2
      %v1249 = vmul.f32 %v780, 0.2
      %v1250 = vmul.f32 %v783, 0.2
      %v1251 = vmul.f32 %v786, 0.2
      %v1252 = vmul.f32 %v789, 0.2
      %v1253 = vmul.f32 %v792, 0.2
      %v1254 = vmul.f32 %v795, 0.2
      %v1255 = vmul.f32 %v798, 0.2
      %v1256 = vmul.f32 %v801, 0.2
      %v1257 = vmul.f32 %v804, 0.2
      %v1258 = vmul.f32 %v807, 0.2
      %v1259 = vmul.f32 %v810, 0.2
      %v1260 = vmul.f32 %v813, 0.2
      %v1261 = vmul.f32 %v816, 0.2
      %v1262 = vmul.f32 %v819, 0.2
      %v1263 = vmul.f32 %v822, 0.2
      %v1264 = vmul.f32 %v825, 0.2
      %v1265 = vmul.f32 %v828, 0.2
      %v1266 = vmul.f32 %v831, 0.2
      %v1267 = vmul.f32 %v834, 0.2
      %v1268 = vmul.f32 %v837, 0.2
      %v1269 = vmul.f32 %v840, 0.2
      %v1270 = vmul.f32 %v843, 0.2
      %v1271 = vmul.f32 %v846, 0.2
      %v1272 = vmul.f32 %v849, 0.2
      %v1273 = vmul.f32 %v852, 0.2
      %v1274 = vmul.f32 %v855, 0.2
      %v1275 = vmul.f32 %v858, 0.2
      %v1276 = vmul.f32 %v861, 0.2
      %v1277 = vmul.f32 %v864, 0.2
      %v1278 = vmul.f32 %v867, 0.2
      %v1279 = vmul.f32 %v870, 0.2
      %v1280 = vmul.f32 %v873, 0.2
      %v1281 = vmul.f32 %v876, 0.2
      %v1282 = vmul.f32 %v879, 0.2
      %v1283 = vmul.f32 %v882, 0.2
      %v1284 = vmul.f32 %v885, 0.2
      %v1285 = vmul.f32 %v888, 0.2
      %v1286 = vmul.f32 %v891, 0.2
      %v1287 = vmul.f32 %v894, 0.2
      %v1288 = vmul.f32 %v897, 0.2
      %v1289 = vmul.f32 %v900, 0.2
      %v1290 = vmul.f32 %v903, 0.2
      %v1291 = vmul.f32 %v906, 0.2
      %v1292 = vmul.f32 %v909, 0.2
      %v1293 = vmul.f32 %v912, 0.2
      %v1294 = vmul.f32 %v915, 0.2
      %v1295 = vmul.f32 %v918, 0.2
      %v1296 = vmul.f32 %v921, 0.2
      %v1297 = vmul.f32 %v924, 0.2
      %v1298 = vmul.f32 %v927, 0.2
      %v1299 = vmul.f32 %v930, 0.2
      %v1300 = vmul.f32 %v933, 0.2
      %v1301 = vmul.f32 %v936, 0.2
      %v1302 = vmul.f32 %v939, 0.2
      %v1303 = vmul.f32 %v942, 0.2
      %v1304 = vmul.f32 %v945, 0.2
      %v1305 = vmul.f32 %v948, 0.2
      %v1306 = vmul.f32 %v951, 0.2
      %v1307 = vmul.f32 %v954, 0.2
      %v1308 = vmul.f32 %v957, 0.2
      %v1309 = vmul.f32 %v960, 0.2
      %v1310 = vmul.f32 %v963, 0.2
      %v1311 = vmul.f32 %v966, 0.2
      %v1312 = vmul.f32 %v969, 0.2
      %v1313 = vmul.f32 %v972, 0.2
      %v1314 = vmul.f32 %v975, 0.2
      %v1315 = vmul.f32 %v978, 0.2
      %v1316 = vmul.f32 %v981, 0.2
      %v1317 = vmul.f32 %v984, 0.2
      %v1318 = vmul.f32 %v987, 0.2
      %v1319 = vmul.f32 %v990, 0.2
      %v1320 = vmul.f32 %v993, 0.2
      %v1321 = vmul.f32 %v996, 0.2
      %v1322 = vmul.f32 %v999, 0.2
      %v1323 = vmul.f32 %v1002, 0.2
      %v1324 = vmul.f32 %v1005, 0.2
      %v1325 = vmul.f32 %v1008, 0.2
      %v1326 = vmul.f32 %v1011, 0.2
      %v1327 = vmul.f32 %v1014, 0.2
      %v1328 = vmul.f32 %v1017, 0.2
      %v1329 = vmul.f32 %v1020, 0.2
      %v1330 = vmul.f32 %v1023, 0.2
      %v1331 = vmul.f32 %v1026, 0.2
      %v1332 = vmul.f32 %v1029, 0.2
      %v1333 = vmul.f32 %v1032, 0.2
      %v1334 = vmul.f32 %v1035, 0.2
      %v1335 = vmul.f32 %v1038, 0.2
      %v1336 = vmul.f32 %v1041, 0.2
      %v1337 = vmul.f32 %v1044, 0.2
      %v1338 = vmul.f32 %v1047, 0.2
      %v1339 = vmul.f32 %v1050, 0.2
      %v1340 = vmul.f32 %v1053, 0.2
      %v1341 = vmul.f32 %v1056, 0.2
      %v1342 = vmul.f32 %v1059, 0.2
      %v1343 = vmul.f32 %v1062, 0.2
      %v1344 = vmul.f32 %v1065, 0.2
      %v1345 = vmul.f32 %v1068, 0.2
      %v1346 = vmul.f32 %v1071, 0.2
      %v1347 = vmul.f32 %v1074, 0.2
      %v1348 = vmul.f32 %v1077, 0.2
      %v1349 = vmul.f32 %v1080, 0.2
      %v1350 = vmul.f32 %v1083, 0.2
      %v1351 = vmul.f32 %v1086, 0.2
      %v1352 = vmul.f32 %v1089, 0.2
      %v1353 = vmul.f32 %v1092, 0.2
      %v1354 = vmul.f32 %v1095, 0.2
      %v1355 = vmul.f32 %v1098, 0.2
      %v1356 = vsel %vm1100, %v717, %v1228
      %v1357 = vsel %vm1101, %v720, %v1229
      %v1358 = vsel %vm1102, %v723, %v1230
      %v1359 = vsel %vm1103, %v726, %v1231
      %v1360 = vsel %vm1104, %v729, %v1232
      %v1361 = vsel %vm1105, %v732, %v1233
      %v1362 = vsel %vm1106, %v735, %v1234
      %v1363 = vsel %vm1107, %v738, %v1235
      %v1364 = vsel %vm1108, %v741, %v1236
      %v1365 = vsel %vm1109, %v744, %v1237
      %v1366 = vsel %vm1110, %v747, %v1238
      %v1367 = vsel %vm1111, %v750, %v1239
      %v1368 = vsel %vm1112, %v753, %v1240
      %v1369 = vsel %vm1113, %v756, %v1241
      %v1370 = vsel %vm1114, %v759, %v1242
      %v1371 = vsel %vm1115, %v762, %v1243
      %v1372 = vsel %vm1116, %v765, %v1244
      %v1373 = vsel %vm1117, %v768, %v1245
      %v1374 = vsel %vm1118, %v771, %v1246
      %v1375 = vsel %vm1119, %v774, %v1247
      %v1376 = vsel %vm1120, %v777, %v1248
      %v1377 = vsel %vm1121, %v780, %v1249
      %v1378 = vsel %vm1122, %v783, %v1250
      %v1379 = vsel %vm1123, %v786, %v1251
      %v1380 = vsel %vm1124, %v789, %v1252
      %v1381 = vsel %vm1125, %v792, %v1253
      %v1382 = vsel %vm1126, %v795, %v1254
      %v1383 = vsel %vm1127, %v798, %v1255
      %v1384 = vsel %vm1128, %v801, %v1256
      %v1385 = vsel %vm1129, %v804, %v1257
      %v1386 = vsel %vm1130, %v807, %v1258
      %v1387 = vsel %vm1131, %v810, %v1259
      %v1388 = vsel %vm1132, %v813, %v1260
      %v1389 = vsel %vm1133, %v816, %v1261
      %v1390 = vsel %vm1134, %v819, %v1262
      %v1391 = vsel %vm1135, %v822, %v1263
      %v1392 = vsel %vm1136, %v825, %v1264
      %v1393 = vsel %vm1137, %v828, %v1265
      %v1394 = vsel %vm1138, %v831, %v1266
      %v1395 = vsel %vm1139, %v834, %v1267
      %v1396 = vsel %vm1140, %v837, %v1268
      %v1397 = vsel %vm1141, %v840, %v1269
      %v1398 = vsel %vm1142, %v843, %v1270
      %v1399 = vsel %vm1143, %v846, %v1271
      %v1400 = vsel %vm1144, %v849, %v1272
      %v1401 = vsel %vm1145, %v852, %v1273
      %v1402 = vsel %vm1146, %v855, %v1274
      %v1403 = vsel %vm1147, %v858, %v1275
      %v1404 = vsel %vm1148, %v861, %v1276
      %v1405 = vsel %vm1149, %v864, %v1277
      %v1406 = vsel %vm1150, %v867, %v1278
      %v1407 = vsel %vm1151, %v870, %v1279
      %v1408 = vsel %vm1152, %v873, %v1280
      %v1409 = vsel %vm1153, %v876, %v1281
      %v1410 = vsel %vm1154, %v879, %v1282
      %v1411 = vsel %vm1155, %v882, %v1283
      %v1412 = vsel %vm1156, %v885, %v1284
      %v1413 = vsel %vm1157, %v888, %v1285
      %v1414 = vsel %vm1158, %v891, %v1286
      %v1415 = vsel %vm1159, %v894, %v1287
      %v1416 = vsel %vm1160, %v897, %v1288
      %v1417 = vsel %vm1161, %v900, %v1289
      %v1418 = vsel %vm1162, %v903, %v1290
      %v1419 = vsel %vm1163, %v906, %v1291
      %v1420 = vsel %vm1164, %v909, %v1292
      %v1421 = vsel %vm1165, %v912, %v1293
      %v1422 = vsel %vm1166, %v915, %v1294
      %v1423 = vsel %vm1167, %v918, %v1295
      %v1424 = vsel %vm1168, %v921, %v1296
      %v1425 = vsel %vm1169, %v924, %v1297
      %v1426 = vsel %vm1170, %v927, %v1298
      %v1427 = vsel %vm1171, %v930, %v1299
      %v1428 = vsel %vm1172, %v933, %v1300
      %v1429 = vsel %vm1173, %v936, %v1301
      %v1430 = vsel %vm1174, %v939, %v1302
      %v1431 = vsel %vm1175, %v942, %v1303
      %v1432 = vsel %vm1176, %v945, %v1304
      %v1433 = vsel %vm1177, %v948, %v1305
      %v1434 = vsel %vm1178, %v951, %v1306
      %v1435 = vsel %vm1179, %v954, %v1307
      %v1436 = vsel %vm1180, %v957, %v1308
      %v1437 = vsel %vm1181, %v960, %v1309
      %v1438 = vsel %vm1182, %v963, %v1310
      %v1439 = vsel %vm1183, %v966, %v1311
      %v1440 = vsel %vm1184, %v969, %v1312
      %v1441 = vsel %vm1185, %v972, %v1313
      %v1442 = vsel %vm1186, %v975, %v1314
      %v1443 = vsel %vm1187, %v978, %v1315
      %v1444 = vsel %vm1188, %v981, %v1316
      %v1445 = vsel %vm1189, %v984, %v1317
      %v1446 = vsel %vm1190, %v987, %v1318
      %v1447 = vsel %vm1191, %v990, %v1319
      %v1448 = vsel %vm1192, %v993, %v1320
      %v1449 = vsel %vm1193, %v996, %v1321
      %v1450 = vsel %vm1194, %v999, %v1322
      %v1451 = vsel %vm1195, %v1002, %v1323
      %v1452 = vsel %vm1196, %v1005, %v1324
      %v1453 = vsel %vm1197, %v1008, %v1325
      %v1454 = vsel %vm1198, %v1011, %v1326
      %v1455 = vsel %vm1199, %v1014, %v1327
      %v1456 = vsel %vm1200, %v1017, %v1328
      %v1457 = vsel %vm1201, %v1020, %v1329
      %v1458 = vsel %vm1202, %v1023, %v1330
      %v1459 = vsel %vm1203, %v1026, %v1331
      %v1460 = vsel %vm1204, %v1029, %v1332
      %v1461 = vsel %vm1205, %v1032, %v1333
      %v1462 = vsel %vm1206, %v1035, %v1334
      %v1463 = vsel %vm1207, %v1038, %v1335
      %v1464 = vsel %vm1208, %v1041, %v1336
      %v1465 = vsel %vm1209, %v1044, %v1337
      %v1466 = vsel %vm1210, %v1047, %v1338
      %v1467 = vsel %vm1211, %v1050, %v1339
      %v1468 = vsel %vm1212, %v1053, %v1340
      %v1469 = vsel %vm1213, %v1056, %v1341
      %v1470 = vsel %vm1214, %v1059, %v1342
      %v1471 = vsel %vm1215, %v1062, %v1343
      %v1472 = vsel %vm1216, %v1065, %v1344
      %v1473 = vsel %vm1217, %v1068, %v1345
      %v1474 = vsel %vm1218, %v1071, %v1346
      %v1475 = vsel %vm1219, %v1074, %v1347
      %v1476 = vsel %vm1220, %v1077, %v1348
      %v1477 = vsel %vm1221, %v1080, %v1349
      %v1478 = vsel %vm1222, %v1083, %v1350
      %v1479 = vsel %vm1223, %v1086, %v1351
      %v1480 = vsel %vm1224, %v1089, %v1352
      %v1481 = vsel %vm1225, %v1092, %v1353
      %v1482 = vsel %vm1226, %v1095, %v1354
      %v1483 = vsel %vm1227, %v1098, %v1355
      %vm1484 = vcmask 523264
      %1485 = vst.msk [vmem:[%s172] sm:$0xff] %vm1484, %v1356
      %1486 = vst.msk [vmem:[%s172 + $0x8] sm:$0xff] %vm1484, %v1357
      %1487 = vst.msk [vmem:[%s172 + $0x10] sm:$0xff] %vm1484, %v1358
      %1488 = vst.msk [vmem:[%s172 + $0x18] sm:$0xff] %vm1484, %v1359
      %1489 = vst.msk [vmem:[%s172 + $0x20] sm:$0xff] %vm1484, %v1360
      %1490 = vst.msk [vmem:[%s172 + $0x28] sm:$0xff] %vm1484, %v1361
      %1491 = vst.msk [vmem:[%s172 + $0x30] sm:$0xff] %vm1484, %v1362
      %1492 = vst.msk [vmem:[%s172 + $0x38] sm:$0xff] %vm1484, %v1363
      %1493 = vst.msk [vmem:[%s172 + $0x40] sm:$0xff] %vm1484, %v1364
      %1494 = vst.msk [vmem:[%s172 + $0x48] sm:$0xff] %vm1484, %v1365
      %1495 = vst.msk [vmem:[%s172 + $0x50] sm:$0xff] %vm1484, %v1366
      %1496 = vst.msk [vmem:[%s172 + $0x58] sm:$0xff] %vm1484, %v1367
      %1497 = vst.msk [vmem:[%s172 + $0x60] sm:$0xff] %vm1484, %v1368
      %1498 = vst.msk [vmem:[%s172 + $0x68] sm:$0xff] %vm1484, %v1369
      %1499 = vst.msk [vmem:[%s172 + $0x70] sm:$0xff] %vm1484, %v1370
      %1500 = vst.msk [vmem:[%s172 + $0x78] sm:$0xff] %vm1484, %v1371
      %1501 = vst.msk [vmem:[%s172 + $0x80] sm:$0xff] %vm1484, %v1372
      %1502 = vst.msk [vmem:[%s172 + $0x88] sm:$0xff] %vm1484, %v1373
      %1503 = vst.msk [vmem:[%s172 + $0x90] sm:$0xff] %vm1484, %v1374
      %1504 = vst.msk [vmem:[%s172 + $0x98] sm:$0xff] %vm1484, %v1375
      %1505 = vst.msk [vmem:[%s172 + $0xa0] sm:$0xff] %vm1484, %v1376
      %1506 = vst.msk [vmem:[%s172 + $0xa8] sm:$0xff] %vm1484, %v1377
      %1507 = vst.msk [vmem:[%s172 + $0xb0] sm:$0xff] %vm1484, %v1378
      %1508 = vst.msk [vmem:[%s172 + $0xb8] sm:$0xff] %vm1484, %v1379
      %1509 = vst.msk [vmem:[%s172 + $0xc0] sm:$0xff] %vm1484, %v1380
      %1510 = vst.msk [vmem:[%s172 + $0xc8] sm:$0xff] %vm1484, %v1381
      %1511 = vst.msk [vmem:[%s172 + $0xd0] sm:$0xff] %vm1484, %v1382
      %1512 = vst.msk [vmem:[%s172 + $0xd8] sm:$0xff] %vm1484, %v1383
      %1513 = vst.msk [vmem:[%s172 + $0xe0] sm:$0xff] %vm1484, %v1384
      %1514 = vst.msk [vmem:[%s172 + $0xe8] sm:$0xff] %vm1484, %v1385
      %1515 = vst.msk [vmem:[%s172 + $0xf0] sm:$0xff] %vm1484, %v1386
      %1516 = vst.msk [vmem:[%s172 + $0xf8] sm:$0xff] %vm1484, %v1387
      %1517 = vst.msk [vmem:[%s172 + $0x100] sm:$0xff] %vm1484, %v1388
      %1518 = vst.msk [vmem:[%s172 + $0x108] sm:$0xff] %vm1484, %v1389
      %1519 = vst.msk [vmem:[%s172 + $0x110] sm:$0xff] %vm1484, %v1390
      %1520 = vst.msk [vmem:[%s172 + $0x118] sm:$0xff] %vm1484, %v1391
      %1521 = vst.msk [vmem:[%s172 + $0x120] sm:$0xff] %vm1484, %v1392
      %1522 = vst.msk [vmem:[%s172 + $0x128] sm:$0xff] %vm1484, %v1393
      %1523 = vst.msk [vmem:[%s172 + $0x130] sm:$0xff] %vm1484, %v1394
      %1524 = vst.msk [vmem:[%s172 + $0x138] sm:$0xff] %vm1484, %v1395
      %1525 = vst.msk [vmem:[%s172 + $0x140] sm:$0xff] %vm1484, %v1396
      %1526 = vst.msk [vmem:[%s172 + $0x148] sm:$0xff] %vm1484, %v1397
      %1527 = vst.msk [vmem:[%s172 + $0x150] sm:$0xff] %vm1484, %v1398
      %1528 = vst.msk [vmem:[%s172 + $0x158] sm:$0xff] %vm1484, %v1399
      %1529 = vst.msk [vmem:[%s172 + $0x160] sm:$0xff] %vm1484, %v1400
      %1530 = vst.msk [vmem:[%s172 + $0x168] sm:$0xff] %vm1484, %v1401
      %1531 = vst.msk [vmem:[%s172 + $0x170] sm:$0xff] %vm1484, %v1402
      %1532 = vst.msk [vmem:[%s172 + $0x178] sm:$0xff] %vm1484, %v1403
      %1533 = vst.msk [vmem:[%s172 + $0x180] sm:$0xff] %vm1484, %v1404
      %1534 = vst.msk [vmem:[%s172 + $0x188] sm:$0xff] %vm1484, %v1405
      %1535 = vst.msk [vmem:[%s172 + $0x190] sm:$0xff] %vm1484, %v1406
      %1536 = vst.msk [vmem:[%s172 + $0x198] sm:$0xff] %vm1484, %v1407
      %1537 = vst.msk [vmem:[%s172 + $0x1a0] sm:$0xff] %vm1484, %v1408
      %1538 = vst.msk [vmem:[%s172 + $0x1a8] sm:$0xff] %vm1484, %v1409
      %1539 = vst.msk [vmem:[%s172 + $0x1b0] sm:$0xff] %vm1484, %v1410
      %1540 = vst.msk [vmem:[%s172 + $0x1b8] sm:$0xff] %vm1484, %v1411
      %1541 = vst.msk [vmem:[%s172 + $0x1c0] sm:$0xff] %vm1484, %v1412
      %1542 = vst.msk [vmem:[%s172 + $0x1c8] sm:$0xff] %vm1484, %v1413
      %1543 = vst.msk [vmem:[%s172 + $0x1d0] sm:$0xff] %vm1484, %v1414
      %1544 = vst.msk [vmem:[%s172 + $0x1d8] sm:$0xff] %vm1484, %v1415
      %1545 = vst.msk [vmem:[%s172 + $0x1e0] sm:$0xff] %vm1484, %v1416
      %1546 = vst.msk [vmem:[%s172 + $0x1e8] sm:$0xff] %vm1484, %v1417
      %1547 = vst.msk [vmem:[%s172 + $0x1f0] sm:$0xff] %vm1484, %v1418
      %1548 = vst.msk [vmem:[%s172 + $0x1f8] sm:$0xff] %vm1484, %v1419
      %1549 = vst.msk [vmem:[%s172 + $0x200] sm:$0xff] %vm1484, %v1420
      %1550 = vst.msk [vmem:[%s172 + $0x208] sm:$0xff] %vm1484, %v1421
      %1551 = vst.msk [vmem:[%s172 + $0x210] sm:$0xff] %vm1484, %v1422
      %1552 = vst.msk [vmem:[%s172 + $0x218] sm:$0xff] %vm1484, %v1423
      %1553 = vst.msk [vmem:[%s172 + $0x220] sm:$0xff] %vm1484, %v1424
      %1554 = vst.msk [vmem:[%s172 + $0x228] sm:$0xff] %vm1484, %v1425
      %1555 = vst.msk [vmem:[%s172 + $0x230] sm:$0xff] %vm1484, %v1426
      %1556 = vst.msk [vmem:[%s172 + $0x238] sm:$0xff] %vm1484, %v1427
      %1557 = vst.msk [vmem:[%s172 + $0x240] sm:$0xff] %vm1484, %v1428
      %1558 = vst.msk [vmem:[%s172 + $0x248] sm:$0xff] %vm1484, %v1429
      %1559 = vst.msk [vmem:[%s172 + $0x250] sm:$0xff] %vm1484, %v1430
      %1560 = vst.msk [vmem:[%s172 + $0x258] sm:$0xff] %vm1484, %v1431
      %1561 = vst.msk [vmem:[%s172 + $0x260] sm:$0xff] %vm1484, %v1432
      %1562 = vst.msk [vmem:[%s172 + $0x268] sm:$0xff] %vm1484, %v1433
      %1563 = vst.msk [vmem:[%s172 + $0x270] sm:$0xff] %vm1484, %v1434
      %1564 = vst.msk [vmem:[%s172 + $0x278] sm:$0xff] %vm1484, %v1435
      %1565 = vst.msk [vmem:[%s172 + $0x280] sm:$0xff] %vm1484, %v1436
      %1566 = vst.msk [vmem:[%s172 + $0x288] sm:$0xff] %vm1484, %v1437
      %1567 = vst.msk [vmem:[%s172 + $0x290] sm:$0xff] %vm1484, %v1438
      %1568 = vst.msk [vmem:[%s172 + $0x298] sm:$0xff] %vm1484, %v1439
      %1569 = vst.msk [vmem:[%s172 + $0x2a0] sm:$0xff] %vm1484, %v1440
      %1570 = vst.msk [vmem:[%s172 + $0x2a8] sm:$0xff] %vm1484, %v1441
      %1571 = vst.msk [vmem:[%s172 + $0x2b0] sm:$0xff] %vm1484, %v1442
      %1572 = vst.msk [vmem:[%s172 + $0x2b8] sm:$0xff] %vm1484, %v1443
      %1573 = vst.msk [vmem:[%s172 + $0x2c0] sm:$0xff] %vm1484, %v1444
      %1574 = vst.msk [vmem:[%s172 + $0x2c8] sm:$0xff] %vm1484, %v1445
      %1575 = vst.msk [vmem:[%s172 + $0x2d0] sm:$0xff] %vm1484, %v1446
      %1576 = vst.msk [vmem:[%s172 + $0x2d8] sm:$0xff] %vm1484, %v1447
      %1577 = vst.msk [vmem:[%s172 + $0x2e0] sm:$0xff] %vm1484, %v1448
      %1578 = vst.msk [vmem:[%s172 + $0x2e8] sm:$0xff] %vm1484, %v1449
      %1579 = vst.msk [vmem:[%s172 + $0x2f0] sm:$0xff] %vm1484, %v1450
      %1580 = vst.msk [vmem:[%s172 + $0x2f8] sm:$0xff] %vm1484, %v1451
      %1581 = vst.msk [vmem:[%s172 + $0x300] sm:$0xff] %vm1484, %v1452
      %1582 = vst.msk [vmem:[%s172 + $0x308] sm:$0xff] %vm1484, %v1453
      %1583 = vst.msk [vmem:[%s172 + $0x310] sm:$0xff] %vm1484, %v1454
      %1584 = vst.msk [vmem:[%s172 + $0x318] sm:$0xff] %vm1484, %v1455
      %1585 = vst.msk [vmem:[%s172 + $0x320] sm:$0xff] %vm1484, %v1456
      %1586 = vst.msk [vmem:[%s172 + $0x328] sm:$0xff] %vm1484, %v1457
      %1587 = vst.msk [vmem:[%s172 + $0x330] sm:$0xff] %vm1484, %v1458
      %1588 = vst.msk [vmem:[%s172 + $0x338] sm:$0xff] %vm1484, %v1459
      %1589 = vst.msk [vmem:[%s172 + $0x340] sm:$0xff] %vm1484, %v1460
      %1590 = vst.msk [vmem:[%s172 + $0x348] sm:$0xff] %vm1484, %v1461
      %1591 = vst.msk [vmem:[%s172 + $0x350] sm:$0xff] %vm1484, %v1462
      %1592 = vst.msk [vmem:[%s172 + $0x358] sm:$0xff] %vm1484, %v1463
      %1593 = vst.msk [vmem:[%s172 + $0x360] sm:$0xff] %vm1484, %v1464
      %1594 = vst.msk [vmem:[%s172 + $0x368] sm:$0xff] %vm1484, %v1465
      %1595 = vst.msk [vmem:[%s172 + $0x370] sm:$0xff] %vm1484, %v1466
      %1596 = vst.msk [vmem:[%s172 + $0x378] sm:$0xff] %vm1484, %v1467
      %1597 = vst.msk [vmem:[%s172 + $0x380] sm:$0xff] %vm1484, %v1468
      %1598 = vst.msk [vmem:[%s172 + $0x388] sm:$0xff] %vm1484, %v1469
      %1599 = vst.msk [vmem:[%s172 + $0x390] sm:$0xff] %vm1484, %v1470
      %1600 = vst.msk [vmem:[%s172 + $0x398] sm:$0xff] %vm1484, %v1471
      %1601 = vst.msk [vmem:[%s172 + $0x3a0] sm:$0xff] %vm1484, %v1472
      %1602 = vst.msk [vmem:[%s172 + $0x3a8] sm:$0xff] %vm1484, %v1473
      %1603 = vst.msk [vmem:[%s172 + $0x3b0] sm:$0xff] %vm1484, %v1474
      %1604 = vst.msk [vmem:[%s172 + $0x3b8] sm:$0xff] %vm1484, %v1475
      %1605 = vst.msk [vmem:[%s172 + $0x3c0] sm:$0xff] %vm1484, %v1476
      %1606 = vst.msk [vmem:[%s172 + $0x3c8] sm:$0xff] %vm1484, %v1477
      %1607 = vst.msk [vmem:[%s172 + $0x3d0] sm:$0xff] %vm1484, %v1478
      %1608 = vst.msk [vmem:[%s172 + $0x3d8] sm:$0xff] %vm1484, %v1479
      %1609 = vst.msk [vmem:[%s172 + $0x3e0] sm:$0xff] %vm1484, %v1480
      %1610 = vst.msk [vmem:[%s172 + $0x3e8] sm:$0xff] %vm1484, %v1481
      %1611 = vst.msk [vmem:[%s172 + $0x3f0] sm:$0xff] %vm1484, %v1482
      %1612 = vst.msk [vmem:[%s172 + $0x3f8] sm:$0xff] %vm1484, %v1483
      %s1613 = smul.u32 128, %s14
      %p1614 = scmp.lt.s32.totalorder %s1613, 255
      %s1615 = scalar_select %p1614, %s1613, 255
      %s1616 = smul.addr %s1615, 8
      %s1617 = scalar_lea.vmem %s3, %s1616
      // Predicated region
      $region33: #{tpu_custom_call.1} parent=31 // pred_check
        %p1618 = pneg %p100
      $region34: #{tpu_custom_call.1} parent=31 // pred_check_branch
        %1620 = sbr.rel (%p1618) target = $region36
      $region35: #{tpu_custom_call.1} parent=31 // pred_region
        %s1621 = smul.u32 128, %s14
      $region36: #{tpu_custom_call.1} parent=31 // pred_fallthru
        _
    $region32: #{tpu_custom_call.1} parent=5 // pred_fallthru
      _
    %p1622 = scmp.le.s32.totalorder 2, %s9
    // Predicated region
    $region37: #{tpu_custom_call.1} parent=5 // pred_check
      %p1623 = pneg %p1622
    $region38: #{tpu_custom_call.1} parent=5 // pred_check_branch
      %1625 = sbr.rel (%p1623) target = $region40
    $region39: #{tpu_custom_call.1} parent=5 // pred_region
      %s1626 = ssub.s32 %s9, 2
      // Predicated region
      $region41: #{tpu_custom_call.1} parent=39 // pred_check
        %p1627 = pneg %p106
      $region42: #{tpu_custom_call.1} parent=39 // pred_check_branch
        %1629 = sbr.rel (%p1627) target = $region44
      $region43: #{tpu_custom_call.1} parent=39 // pred_region
        %s1630 = smul.u32 128, %s15
        %p1631 = scmp.lt.s32.totalorder %s1630, 255
        %s1632 = scalar_select %p1631, %s1630, 255
        %s1633 = smul.addr %s1632, 8
        %s1634 = scalar_lea.vmem %s3, %s1633
      $region44: #{tpu_custom_call.1} parent=39 // pred_fallthru
        _
    $region40: #{tpu_custom_call.1} parent=5 // pred_fallthru
      _
  $region6: #{tpu_custom_call.1} parent=0 // loop_footer
    %s13 = sadd.s32 1, %s9
  $region7: #{tpu_custom_call.1} parent=0 // loop_footer_branch
    %8 = sbr.rel target = $region3
  $region8: #{tpu_custom_call.1} parent=0 // loop_exit
    _

</llo_original>
